<compile_context>
chip_gen: v5e
topology: v5e:2x2
jax: 0.10.0
libtpu: 0.0.40
codegen_flags: <defaults>
</compile_context>

<pallas_src>
import jax
import jax.numpy as jnp
from jax.experimental import pallas as pl
from jax.experimental.pallas import tpu as pltpu


# ----------------------------------------------------------------------------
# Fused kernel: wavefront over (layers x time) + FC head, one invocation per
# batch block.
# ----------------------------------------------------------------------------
def _make_fused_lstm_kernel(T, H, num_layers):
    def kernel(x_ref, *refs):
        # refs = [wcat_0, b_0, ..., wcat_{L-1}, b_{L-1}, w_fc, b_fc, out_ref]
        L = num_layers
        wcat = [refs[2 * l][...] for l in range(L)]        # (H+Fin_l, 4H) bf16
        wfc = refs[2 * L][...]                              # (H, O)       bf16
        bfc = refs[2 * L + 1][...]                          # (1, O)       f32
        out_ref = refs[2 * L + 2]
        Bb = out_ref.shape[0]

        # Bias broadcast hoisted out of the loops (JAX does not CSE broadcasts).
        bias = [jnp.broadcast_to(refs[2 * l + 1][...], (Bb, 4 * H))
                for l in range(L)]                           # f32

        h = [jnp.zeros((Bb, H), jnp.float32) for _ in range(L)]
        c = [jnp.zeros((Bb, H), jnp.float32) for _ in range(L)]

        # Wavefront: outer step s runs layer l at time t = s - l.  Layers are
        # visited top-down so layer l still reads h[l-1] from time t (produced
        # at outer step s-1) before layer l-1 overwrites it with time t+1.
        for s in range(T + L - 1):
            for l in reversed(range(L)):
                t = s - l
                if t < 0 or t >= T:
                    continue
                if l == 0:
                    inp = x_ref[:, t, :]                     # (Bb, F) bf16
                else:
                    inp = h[l - 1].astype(jnp.bfloat16)      # (Bb, H) bf16
                # One fused matmul per cell: [h_prev | input] @ [W_hh; W_ih].
                cat = jnp.concatenate(
                    [h[l].astype(jnp.bfloat16), inp], axis=1)
                gates = jnp.dot(cat, wcat[l],
                                preferred_element_type=jnp.float32) + bias[l]

                # Gate order (pre-permuted offline): [i, f, o, g].
                # Sigmoid once on the whole aligned (Bb, 4H) vreg; tanh only on
                # the last H lanes (the cell-candidate gate).
                sig = jax.nn.sigmoid(gates)
                i_g = sig[:, 0 * H:1 * H]
                f_g = sig[:, 1 * H:2 * H]
                o_g = sig[:, 2 * H:3 * H]
                g_g = jnp.tanh(gates[:, 3 * H:4 * H])

                c[l] = f_g * c[l] + i_g * g_g                # f32 cell state
                h[l] = o_g * jnp.tanh(c[l])

        # FC head on the last layer's final hidden state (fused in).
        out_ref[...] = (
            jnp.dot(h[L - 1].astype(jnp.bfloat16), wfc,
                    preferred_element_type=jnp.float32) + bfc
        )

    return kernel


# ----------------------------------------------------------------------------
# Parameter init (PyTorch-style U(-1/sqrt(H), 1/sqrt(H))) + kernel-side layout.
# ----------------------------------------------------------------------------
def _permute_gate_cols(w4h):
    """Reorder gate column blocks [i, f, g, o] -> [i, f, o, g]."""
    i, f, g, o = jnp.split(w4h, 4, axis=-1)
    return jnp.concatenate([i, f, o, g], axis=-1)


def init_params(key, input_size, hidden_size, num_layers, output_size):
    params = {"layers": []}
    H = hidden_size
    bound = 1.0 / jnp.sqrt(jnp.float32(H))
    for layer in range(num_layers):
        in_f = input_size if layer == 0 else H
        key, k1, k2, k3, k4 = jax.random.split(key, 5)
        w_ih = jax.random.uniform(k1, (4 * H, in_f), jnp.float32, -bound, bound)
        w_hh = jax.random.uniform(k2, (4 * H, H), jnp.float32, -bound, bound)
        b_ih = jax.random.uniform(k3, (4 * H,), jnp.float32, -bound, bound)
        b_hh = jax.random.uniform(k4, (4 * H,), jnp.float32, -bound, bound)
        # Kernel layout: vertically stacked [W_hh^T ; W_ih^T] (recurrent rows
        # first, matching concat([h, input])), gate columns permuted to
        # [i,f,o,g], cast to bf16 (MXU operand).  Bias folded & permuted, f32.
        w_cat = jnp.concatenate(
            [_permute_gate_cols(w_hh.T), _permute_gate_cols(w_ih.T)],
            axis=0).astype(jnp.bfloat16)                      # (H+in_f, 4H)
        b = _permute_gate_cols((b_ih + b_hh).reshape(1, 4 * H))  # (1, 4H) f32
        params["layers"].append({
            "w_cat": w_cat, "b": b,
            # f32 originals (PyTorch gate order) kept for the pure-JAX reference
            "w_ih_t": w_ih.T, "w_hh_t": w_hh.T,
            "b_ref": (b_ih + b_hh).reshape(1, 4 * H),
        })
    key, k5, k6 = jax.random.split(key, 3)
    w_fc = jax.random.uniform(k5, (output_size, H), jnp.float32, -bound, bound)
    b_fc = jax.random.uniform(k6, (output_size,), jnp.float32, -bound, bound)
    params["w_fc_t"] = w_fc.T.astype(jnp.bfloat16)            # (H, O) bf16
    params["w_fc_t_f32"] = w_fc.T
    params["b_fc"] = b_fc.reshape(1, output_size)             # (1, O) f32
    return params


# ----------------------------------------------------------------------------
# Forward wrapper.
# ----------------------------------------------------------------------------
@jax.jit
def lstm_model_forward(params, x_btf):
    """x_btf: (B, T, input_size), batch_first -> (B, output_size)."""
    layers = params["layers"]
    assert len(layers) >= 1, "num_layers must be >= 1"
    x = x_btf.astype(jnp.bfloat16)                  # bf16 MXU operand, no transpose
    B, T, F = x.shape
    H = layers[0]["b"].shape[1] // 4
    O = params["w_fc_t"].shape[1]
    L = len(layers)

    # Batch-chunk grid: grid=(1,) at small B; at large B independent batch
    # blocks are marked "parallel" so v7x can shard them across its 2 TCs.
    block_b = B if (B <= 128 or B % 128 != 0) else 128
    nb = B // block_b

    args = [x]
    in_specs = [pl.BlockSpec((block_b, T, F), lambda i: (i, 0, 0))]
    for lp in layers:
        args.append(lp["w_cat"])
        in_specs.append(pl.BlockSpec(lp["w_cat"].shape, lambda i: (0, 0)))
        args.append(lp["b"])
        in_specs.append(pl.BlockSpec(lp["b"].shape, lambda i: (0, 0)))
    args.append(params["w_fc_t"])
    in_specs.append(pl.BlockSpec(params["w_fc_t"].shape, lambda i: (0, 0)))
    args.append(params["b_fc"])
    in_specs.append(pl.BlockSpec(params["b_fc"].shape, lambda i: (0, 0)))

    kernel = _make_fused_lstm_kernel(T, H, L)
    return pl.pallas_call(
        kernel,
        out_shape=jax.ShapeDtypeStruct((B, O), jnp.float32),
        grid=(nb,),
        in_specs=in_specs,
        out_specs=pl.BlockSpec((block_b, O), lambda i: (i, 0)),
        compiler_params=pltpu.CompilerParams(
            dimension_semantics=("parallel",)),
    )(*args)


# ----------------------------------------------------------------------------
# Pure-JAX f32 reference (PyTorch semantics) for the correctness check.
# ----------------------------------------------------------------------------
def _reference_forward(params, x_btf):
    x = jnp.transpose(x_btf, (1, 0, 2)).astype(jnp.float32)   # (T, B, F)
    T, B, _ = x.shape
    for lp in params["layers"]:
        H = lp["w_hh_t"].shape[0]
        h = jnp.zeros((B, H), jnp.float32)
        c = jnp.zeros((B, H), jnp.float32)
        outs = []
        for t in range(T):
            gates = x[t] @ lp["w_ih_t"] + h @ lp["w_hh_t"] + lp["b_ref"]
            i = jax.nn.sigmoid(gates[:, 0 * H:1 * H])
            f = jax.nn.sigmoid(gates[:, 1 * H:2 * H])
            g = jnp.tanh(gates[:, 2 * H:3 * H])
            o = jax.nn.sigmoid(gates[:, 3 * H:4 * H])
            c = f * c + i * g
            h = o * jnp.tanh(c)
            outs.append(h)
        x = jnp.stack(outs, axis=0)
    return x[-1] @ params["w_fc_t_f32"] + params["b_fc"]


if __name__ == "__main__":
    # Small shapes consistent with a sensor-timeseries LSTM.
    BATCH, SEQ, INPUT_SIZE, HIDDEN_SIZE, NUM_LAYERS, OUTPUT_SIZE = 8, 8, 16, 32, 2, 4

    key = jax.random.PRNGKey(0)
    key, pkey, xkey = jax.random.split(key, 3)
    params = init_params(pkey, INPUT_SIZE, HIDDEN_SIZE, NUM_LAYERS, OUTPUT_SIZE)
    x = jax.random.normal(xkey, (BATCH, SEQ, INPUT_SIZE), jnp.float32)

    out = jax.block_until_ready(lstm_model_forward(params, x))

    ref = _reference_forward(params, x)
    assert out.shape == (BATCH, OUTPUT_SIZE)
    # Tolerance loosened for bf16 MXU operands (cell state / accumulation stay f32).
    max_diff = float(jnp.max(jnp.abs(out - ref)))
    assert jnp.allclose(out, ref, atol=5e-2, rtol=5e-2), (
        f"mismatch vs reference: max|diff|={max_diff:.3e}")

    print("KERNEL_OK")
</pallas_src>

<mosaic_0001>
module attributes {stable_mosaic.version = 11 : i64} {
  func.func @kernel(%arg0: i32, %arg1: memref<8x8x16xbf16, #tpu.memory_space<vmem>>, %arg2: memref<48x128xbf16, #tpu.memory_space<vmem>>, %arg3: memref<1x128xf32, #tpu.memory_space<vmem>>, %arg4: memref<64x128xbf16, #tpu.memory_space<vmem>>, %arg5: memref<1x128xf32, #tpu.memory_space<vmem>>, %arg6: memref<32x4xbf16, #tpu.memory_space<vmem>>, %arg7: memref<1x4xf32, #tpu.memory_space<vmem>>, %arg8: memref<8x4xf32, #tpu.memory_space<vmem>>) attributes {dimension_semantics = [#tpu.dimension_semantics<parallel>], iteration_bounds = array<i64: 1>, scalar_prefetch = 0 : i64, scratch_operands = 0 : i64, tpu.core_type = #tpu.core_type<tc>, window_params = [{transform_indices = @transform_0, window_bounds = array<i64: 8, 8, 16>}, {pipeline_mode = #tpu.pipeline_mode<synchronous>, transform_indices = @transform_1, window_bounds = array<i64: 48, 128>}, {pipeline_mode = #tpu.pipeline_mode<synchronous>, transform_indices = @transform_2, window_bounds = array<i64: 1, 128>}, {pipeline_mode = #tpu.pipeline_mode<synchronous>, transform_indices = @transform_3, window_bounds = array<i64: 64, 128>}, {pipeline_mode = #tpu.pipeline_mode<synchronous>, transform_indices = @transform_4, window_bounds = array<i64: 1, 128>}, {pipeline_mode = #tpu.pipeline_mode<synchronous>, transform_indices = @transform_5, window_bounds = array<i64: 32, 4>}, {pipeline_mode = #tpu.pipeline_mode<synchronous>, transform_indices = @transform_6, window_bounds = array<i64: 1, 4>}, {transform_indices = @transform_7, window_bounds = array<i64: 8, 4>}]} {
    %c0 = arith.constant 0 : index
    %c0_0 = arith.constant 0 : index
    %0 = vector.load %arg2[%c0, %c0_0] : memref<48x128xbf16, #tpu.memory_space<vmem>>, vector<48x128xbf16>
    %c0_1 = arith.constant 0 : index
    %c0_2 = arith.constant 0 : index
    %1 = vector.load %arg4[%c0_1, %c0_2] : memref<64x128xbf16, #tpu.memory_space<vmem>>, vector<64x128xbf16>
    %c0_3 = arith.constant 0 : index
    %c0_4 = arith.constant 0 : index
    %2 = vector.load %arg6[%c0_3, %c0_4] : memref<32x4xbf16, #tpu.memory_space<vmem>>, vector<32x4xbf16>
    %c0_5 = arith.constant 0 : index
    %c0_6 = arith.constant 0 : index
    %3 = vector.load %arg7[%c0_5, %c0_6] : memref<1x4xf32, #tpu.memory_space<vmem>>, vector<1x4xf32>
    %c0_7 = arith.constant 0 : index
    %c0_8 = arith.constant 0 : index
    %4 = vector.load %arg3[%c0_7, %c0_8] : memref<1x128xf32, #tpu.memory_space<vmem>>, vector<1x128xf32>
    %5 = vector.shape_cast %4 : vector<1x128xf32> to vector<1x128xf32>
    %6 = vector.broadcast %5 : vector<1x128xf32> to vector<8x128xf32>
    %c0_9 = arith.constant 0 : index
    %c0_10 = arith.constant 0 : index
    %7 = vector.load %arg5[%c0_9, %c0_10] : memref<1x128xf32, #tpu.memory_space<vmem>>, vector<1x128xf32>
    %8 = vector.shape_cast %7 : vector<1x128xf32> to vector<1x128xf32>
    %9 = vector.broadcast %8 : vector<1x128xf32> to vector<8x128xf32>
    %cst = arith.constant 0.000000e+00 : f32
    %10 = vector.broadcast %cst : f32 to vector<8x32xf32>
    %cst_11 = arith.constant 0.000000e+00 : f32
    %11 = vector.broadcast %cst_11 : f32 to vector<8x32xf32>
    %cst_12 = arith.constant 0.000000e+00 : f32
    %12 = vector.broadcast %cst_12 : f32 to vector<8x32xf32>
    %cst_13 = arith.constant 0.000000e+00 : f32
    %13 = vector.broadcast %cst_13 : f32 to vector<8x32xf32>
    %c0_14 = arith.constant 0 : index
    %c0_15 = arith.constant 0 : index
    %c0_16 = arith.constant 0 : index
    %14 = vector.load %arg1[%c0_14, %c0_15, %c0_16] : memref<8x8x16xbf16, #tpu.memory_space<vmem>>, vector<8x1x16xbf16>
    %15 = vector.shape_cast %14 : vector<8x1x16xbf16> to vector<8x16xbf16>
    %16 = arith.truncf %10 : vector<8x32xf32> to vector<8x32xbf16>
    %17 = tpu.concatenate %16, %15 in 1 : vector<8x32xbf16>, vector<8x16xbf16> -> vector<8x48xbf16>
    %cst_17 = arith.constant dense<0.000000e+00> : vector<8x128xf32>
    %18 = tpu.matmul %17, %0, %cst_17 {dimension_numbers = #tpu.dot_dimension_numbers<[1], [0], [0], [1], [0, 0, 1, 1], [], []>} : vector<8x48xbf16>, vector<48x128xbf16>, vector<8x128xf32> -> vector<8x128xf32>
    %19 = arith.addf %18, %6 : vector<8x128xf32>
    %20 = arith.negf %19 : vector<8x128xf32>
    %21 = math.exp %20 : vector<8x128xf32>
    %cst_18 = arith.constant 1.000000e+00 : f32
    %22 = vector.broadcast %cst_18 : f32 to vector<8x128xf32>
    %23 = arith.addf %22, %21 : vector<8x128xf32>
    %24 = arith.divf %22, %23 : vector<8x128xf32>
    %25 = vector.extract_strided_slice %24 {offsets = [0, 0], sizes = [8, 32], strides = [1, 1]} : vector<8x128xf32> to vector<8x32xf32>
    %26 = vector.extract_strided_slice %24 {offsets = [0, 32], sizes = [8, 32], strides = [1, 1]} : vector<8x128xf32> to vector<8x32xf32>
    %27 = vector.extract_strided_slice %24 {offsets = [0, 64], sizes = [8, 32], strides = [1, 1]} : vector<8x128xf32> to vector<8x32xf32>
    %28 = vector.extract_strided_slice %19 {offsets = [0, 96], sizes = [8, 32], strides = [1, 1]} : vector<8x128xf32> to vector<8x32xf32>
    %29 = math.tanh %28 : vector<8x32xf32>
    %30 = arith.mulf %26, %12 : vector<8x32xf32>
    %31 = arith.mulf %25, %29 : vector<8x32xf32>
    %32 = arith.addf %30, %31 : vector<8x32xf32>
    %33 = math.tanh %32 : vector<8x32xf32>
    %34 = arith.mulf %27, %33 : vector<8x32xf32>
    %35 = arith.truncf %34 : vector<8x32xf32> to vector<8x32xbf16>
    %36 = arith.truncf %11 : vector<8x32xf32> to vector<8x32xbf16>
    %37 = tpu.concatenate %36, %35 in 1 : vector<8x32xbf16>, vector<8x32xbf16> -> vector<8x64xbf16>
    %cst_19 = arith.constant dense<0.000000e+00> : vector<8x128xf32>
    %38 = tpu.matmul %37, %1, %cst_19 {dimension_numbers = #tpu.dot_dimension_numbers<[1], [0], [0], [1], [0, 0, 1, 1], [], []>} : vector<8x64xbf16>, vector<64x128xbf16>, vector<8x128xf32> -> vector<8x128xf32>
    %39 = arith.addf %38, %9 : vector<8x128xf32>
    %40 = arith.negf %39 : vector<8x128xf32>
    %41 = math.exp %40 : vector<8x128xf32>
    %cst_20 = arith.constant 1.000000e+00 : f32
    %42 = vector.broadcast %cst_20 : f32 to vector<8x128xf32>
    %43 = arith.addf %42, %41 : vector<8x128xf32>
    %44 = arith.divf %42, %43 : vector<8x128xf32>
    %45 = vector.extract_strided_slice %44 {offsets = [0, 0], sizes = [8, 32], strides = [1, 1]} : vector<8x128xf32> to vector<8x32xf32>
    %46 = vector.extract_strided_slice %44 {offsets = [0, 32], sizes = [8, 32], strides = [1, 1]} : vector<8x128xf32> to vector<8x32xf32>
    %47 = vector.extract_strided_slice %44 {offsets = [0, 64], sizes = [8, 32], strides = [1, 1]} : vector<8x128xf32> to vector<8x32xf32>
    %48 = vector.extract_strided_slice %39 {offsets = [0, 96], sizes = [8, 32], strides = [1, 1]} : vector<8x128xf32> to vector<8x32xf32>
    %49 = math.tanh %48 : vector<8x32xf32>
    %50 = arith.mulf %46, %13 : vector<8x32xf32>
    %51 = arith.mulf %45, %49 : vector<8x32xf32>
    %52 = arith.addf %50, %51 : vector<8x32xf32>
    %53 = math.tanh %52 : vector<8x32xf32>
    %54 = arith.mulf %47, %53 : vector<8x32xf32>
    %c0_21 = arith.constant 0 : index
    %c1 = arith.constant 1 : index
    %c0_22 = arith.constant 0 : index
    %55 = vector.load %arg1[%c0_21, %c1, %c0_22] : memref<8x8x16xbf16, #tpu.memory_space<vmem>>, vector<8x1x16xbf16>
    %56 = vector.shape_cast %55 : vector<8x1x16xbf16> to vector<8x16xbf16>
    %57 = arith.truncf %34 : vector<8x32xf32> to vector<8x32xbf16>
    %58 = tpu.concatenate %57, %56 in 1 : vector<8x32xbf16>, vector<8x16xbf16> -> vector<8x48xbf16>
    %cst_23 = arith.constant dense<0.000000e+00> : vector<8x128xf32>
    %59 = tpu.matmul %58, %0, %cst_23 {dimension_numbers = #tpu.dot_dimension_numbers<[1], [0], [0], [1], [0, 0, 1, 1], [], []>} : vector<8x48xbf16>, vector<48x128xbf16>, vector<8x128xf32> -> vector<8x128xf32>
    %60 = arith.addf %59, %6 : vector<8x128xf32>
    %61 = arith.negf %60 : vector<8x128xf32>
    %62 = math.exp %61 : vector<8x128xf32>
    %cst_24 = arith.constant 1.000000e+00 : f32
    %63 = vector.broadcast %cst_24 : f32 to vector<8x128xf32>
    %64 = arith.addf %63, %62 : vector<8x128xf32>
    %65 = arith.divf %63, %64 : vector<8x128xf32>
    %66 = vector.extract_strided_slice %65 {offsets = [0, 0], sizes = [8, 32], strides = [1, 1]} : vector<8x128xf32> to vector<8x32xf32>
    %67 = vector.extract_strided_slice %65 {offsets = [0, 32], sizes = [8, 32], strides = [1, 1]} : vector<8x128xf32> to vector<8x32xf32>
    %68 = vector.extract_strided_slice %65 {offsets = [0, 64], sizes = [8, 32], strides = [1, 1]} : vector<8x128xf32> to vector<8x32xf32>
    %69 = vector.extract_strided_slice %60 {offsets = [0, 96], sizes = [8, 32], strides = [1, 1]} : vector<8x128xf32> to vector<8x32xf32>
    %70 = math.tanh %69 : vector<8x32xf32>
    %71 = arith.mulf %67, %32 : vector<8x32xf32>
    %72 = arith.mulf %66, %70 : vector<8x32xf32>
    %73 = arith.addf %71, %72 : vector<8x32xf32>
    %74 = math.tanh %73 : vector<8x32xf32>
    %75 = arith.mulf %68, %74 : vector<8x32xf32>
    %76 = arith.truncf %75 : vector<8x32xf32> to vector<8x32xbf16>
    %77 = arith.truncf %54 : vector<8x32xf32> to vector<8x32xbf16>
    %78 = tpu.concatenate %77, %76 in 1 : vector<8x32xbf16>, vector<8x32xbf16> -> vector<8x64xbf16>
    %cst_25 = arith.constant dense<0.000000e+00> : vector<8x128xf32>
    %79 = tpu.matmul %78, %1, %cst_25 {dimension_numbers = #tpu.dot_dimension_numbers<[1], [0], [0], [1], [0, 0, 1, 1], [], []>} : vector<8x64xbf16>, vector<64x128xbf16>, vector<8x128xf32> -> vector<8x128xf32>
    %80 = arith.addf %79, %9 : vector<8x128xf32>
    %81 = arith.negf %80 : vector<8x128xf32>
    %82 = math.exp %81 : vector<8x128xf32>
    %cst_26 = arith.constant 1.000000e+00 : f32
    %83 = vector.broadcast %cst_26 : f32 to vector<8x128xf32>
    %84 = arith.addf %83, %82 : vector<8x128xf32>
    %85 = arith.divf %83, %84 : vector<8x128xf32>
    %86 = vector.extract_strided_slice %85 {offsets = [0, 0], sizes = [8, 32], strides = [1, 1]} : vector<8x128xf32> to vector<8x32xf32>
    %87 = vector.extract_strided_slice %85 {offsets = [0, 32], sizes = [8, 32], strides = [1, 1]} : vector<8x128xf32> to vector<8x32xf32>
    %88 = vector.extract_strided_slice %85 {offsets = [0, 64], sizes = [8, 32], strides = [1, 1]} : vector<8x128xf32> to vector<8x32xf32>
    %89 = vector.extract_strided_slice %80 {offsets = [0, 96], sizes = [8, 32], strides = [1, 1]} : vector<8x128xf32> to vector<8x32xf32>
    %90 = math.tanh %89 : vector<8x32xf32>
    %91 = arith.mulf %87, %52 : vector<8x32xf32>
    %92 = arith.mulf %86, %90 : vector<8x32xf32>
    %93 = arith.addf %91, %92 : vector<8x32xf32>
    %94 = math.tanh %93 : vector<8x32xf32>
    %95 = arith.mulf %88, %94 : vector<8x32xf32>
    %c0_27 = arith.constant 0 : index
    %c2 = arith.constant 2 : index
    %c0_28 = arith.constant 0 : index
    %96 = vector.load %arg1[%c0_27, %c2, %c0_28] : memref<8x8x16xbf16, #tpu.memory_space<vmem>>, vector<8x1x16xbf16>
    %97 = vector.shape_cast %96 : vector<8x1x16xbf16> to vector<8x16xbf16>
    %98 = arith.truncf %75 : vector<8x32xf32> to vector<8x32xbf16>
    %99 = tpu.concatenate %98, %97 in 1 : vector<8x32xbf16>, vector<8x16xbf16> -> vector<8x48xbf16>
    %cst_29 = arith.constant dense<0.000000e+00> : vector<8x128xf32>
    %100 = tpu.matmul %99, %0, %cst_29 {dimension_numbers = #tpu.dot_dimension_numbers<[1], [0], [0], [1], [0, 0, 1, 1], [], []>} : vector<8x48xbf16>, vector<48x128xbf16>, vector<8x128xf32> -> vector<8x128xf32>
    %101 = arith.addf %100, %6 : vector<8x128xf32>
    %102 = arith.negf %101 : vector<8x128xf32>
    %103 = math.exp %102 : vector<8x128xf32>
    %cst_30 = arith.constant 1.000000e+00 : f32
    %104 = vector.broadcast %cst_30 : f32 to vector<8x128xf32>
    %105 = arith.addf %104, %103 : vector<8x128xf32>
    %106 = arith.divf %104, %105 : vector<8x128xf32>
    %107 = vector.extract_strided_slice %106 {offsets = [0, 0], sizes = [8, 32], strides = [1, 1]} : vector<8x128xf32> to vector<8x32xf32>
    %108 = vector.extract_strided_slice %106 {offsets = [0, 32], sizes = [8, 32], strides = [1, 1]} : vector<8x128xf32> to vector<8x32xf32>
    %109 = vector.extract_strided_slice %106 {offsets = [0, 64], sizes = [8, 32], strides = [1, 1]} : vector<8x128xf32> to vector<8x32xf32>
    %110 = vector.extract_strided_slice %101 {offsets = [0, 96], sizes = [8, 32], strides = [1, 1]} : vector<8x128xf32> to vector<8x32xf32>
    %111 = math.tanh %110 : vector<8x32xf32>
    %112 = arith.mulf %108, %73 : vector<8x32xf32>
    %113 = arith.mulf %107, %111 : vector<8x32xf32>
    %114 = arith.addf %112, %113 : vector<8x32xf32>
    %115 = math.tanh %114 : vector<8x32xf32>
    %116 = arith.mulf %109, %115 : vector<8x32xf32>
    %117 = arith.truncf %116 : vector<8x32xf32> to vector<8x32xbf16>
    %118 = arith.truncf %95 : vector<8x32xf32> to vector<8x32xbf16>
    %119 = tpu.concatenate %118, %117 in 1 : vector<8x32xbf16>, vector<8x32xbf16> -> vector<8x64xbf16>
    %cst_31 = arith.constant dense<0.000000e+00> : vector<8x128xf32>
    %120 = tpu.matmul %119, %1, %cst_31 {dimension_numbers = #tpu.dot_dimension_numbers<[1], [0], [0], [1], [0, 0, 1, 1], [], []>} : vector<8x64xbf16>, vector<64x128xbf16>, vector<8x128xf32> -> vector<8x128xf32>
    %121 = arith.addf %120, %9 : vector<8x128xf32>
    %122 = arith.negf %121 : vector<8x128xf32>
    %123 = math.exp %122 : vector<8x128xf32>
    %cst_32 = arith.constant 1.000000e+00 : f32
    %124 = vector.broadcast %cst_32 : f32 to vector<8x128xf32>
    %125 = arith.addf %124, %123 : vector<8x128xf32>
    %126 = arith.divf %124, %125 : vector<8x128xf32>
    %127 = vector.extract_strided_slice %126 {offsets = [0, 0], sizes = [8, 32], strides = [1, 1]} : vector<8x128xf32> to vector<8x32xf32>
    %128 = vector.extract_strided_slice %126 {offsets = [0, 32], sizes = [8, 32], strides = [1, 1]} : vector<8x128xf32> to vector<8x32xf32>
    %129 = vector.extract_strided_slice %126 {offsets = [0, 64], sizes = [8, 32], strides = [1, 1]} : vector<8x128xf32> to vector<8x32xf32>
    %130 = vector.extract_strided_slice %121 {offsets = [0, 96], sizes = [8, 32], strides = [1, 1]} : vector<8x128xf32> to vector<8x32xf32>
    %131 = math.tanh %130 : vector<8x32xf32>
    %132 = arith.mulf %128, %93 : vector<8x32xf32>
    %133 = arith.mulf %127, %131 : vector<8x32xf32>
    %134 = arith.addf %132, %133 : vector<8x32xf32>
    %135 = math.tanh %134 : vector<8x32xf32>
    %136 = arith.mulf %129, %135 : vector<8x32xf32>
    %c0_33 = arith.constant 0 : index
    %c3 = arith.constant 3 : index
    %c0_34 = arith.constant 0 : index
    %137 = vector.load %arg1[%c0_33, %c3, %c0_34] : memref<8x8x16xbf16, #tpu.memory_space<vmem>>, vector<8x1x16xbf16>
    %138 = vector.shape_cast %137 : vector<8x1x16xbf16> to vector<8x16xbf16>
    %139 = arith.truncf %116 : vector<8x32xf32> to vector<8x32xbf16>
    %140 = tpu.concatenate %139, %138 in 1 : vector<8x32xbf16>, vector<8x16xbf16> -> vector<8x48xbf16>
    %cst_35 = arith.constant dense<0.000000e+00> : vector<8x128xf32>
    %141 = tpu.matmul %140, %0, %cst_35 {dimension_numbers = #tpu.dot_dimension_numbers<[1], [0], [0], [1], [0, 0, 1, 1], [], []>} : vector<8x48xbf16>, vector<48x128xbf16>, vector<8x128xf32> -> vector<8x128xf32>
    %142 = arith.addf %141, %6 : vector<8x128xf32>
    %143 = arith.negf %142 : vector<8x128xf32>
    %144 = math.exp %143 : vector<8x128xf32>
    %cst_36 = arith.constant 1.000000e+00 : f32
    %145 = vector.broadcast %cst_36 : f32 to vector<8x128xf32>
    %146 = arith.addf %145, %144 : vector<8x128xf32>
    %147 = arith.divf %145, %146 : vector<8x128xf32>
    %148 = vector.extract_strided_slice %147 {offsets = [0, 0], sizes = [8, 32], strides = [1, 1]} : vector<8x128xf32> to vector<8x32xf32>
    %149 = vector.extract_strided_slice %147 {offsets = [0, 32], sizes = [8, 32], strides = [1, 1]} : vector<8x128xf32> to vector<8x32xf32>
    %150 = vector.extract_strided_slice %147 {offsets = [0, 64], sizes = [8, 32], strides = [1, 1]} : vector<8x128xf32> to vector<8x32xf32>
    %151 = vector.extract_strided_slice %142 {offsets = [0, 96], sizes = [8, 32], strides = [1, 1]} : vector<8x128xf32> to vector<8x32xf32>
    %152 = math.tanh %151 : vector<8x32xf32>
    %153 = arith.mulf %149, %114 : vector<8x32xf32>
    %154 = arith.mulf %148, %152 : vector<8x32xf32>
    %155 = arith.addf %153, %154 : vector<8x32xf32>
    %156 = math.tanh %155 : vector<8x32xf32>
    %157 = arith.mulf %150, %156 : vector<8x32xf32>
    %158 = arith.truncf %157 : vector<8x32xf32> to vector<8x32xbf16>
    %159 = arith.truncf %136 : vector<8x32xf32> to vector<8x32xbf16>
    %160 = tpu.concatenate %159, %158 in 1 : vector<8x32xbf16>, vector<8x32xbf16> -> vector<8x64xbf16>
    %cst_37 = arith.constant dense<0.000000e+00> : vector<8x128xf32>
    %161 = tpu.matmul %160, %1, %cst_37 {dimension_numbers = #tpu.dot_dimension_numbers<[1], [0], [0], [1], [0, 0, 1, 1], [], []>} : vector<8x64xbf16>, vector<64x128xbf16>, vector<8x128xf32> -> vector<8x128xf32>
    %162 = arith.addf %161, %9 : vector<8x128xf32>
    %163 = arith.negf %162 : vector<8x128xf32>
    %164 = math.exp %163 : vector<8x128xf32>
    %cst_38 = arith.constant 1.000000e+00 : f32
    %165 = vector.broadcast %cst_38 : f32 to vector<8x128xf32>
    %166 = arith.addf %165, %164 : vector<8x128xf32>
    %167 = arith.divf %165, %166 : vector<8x128xf32>
    %168 = vector.extract_strided_slice %167 {offsets = [0, 0], sizes = [8, 32], strides = [1, 1]} : vector<8x128xf32> to vector<8x32xf32>
    %169 = vector.extract_strided_slice %167 {offsets = [0, 32], sizes = [8, 32], strides = [1, 1]} : vector<8x128xf32> to vector<8x32xf32>
    %170 = vector.extract_strided_slice %167 {offsets = [0, 64], sizes = [8, 32], strides = [1, 1]} : vector<8x128xf32> to vector<8x32xf32>
    %171 = vector.extract_strided_slice %162 {offsets = [0, 96], sizes = [8, 32], strides = [1, 1]} : vector<8x128xf32> to vector<8x32xf32>
    %172 = math.tanh %171 : vector<8x32xf32>
    %173 = arith.mulf %169, %134 : vector<8x32xf32>
    %174 = arith.mulf %168, %172 : vector<8x32xf32>
    %175 = arith.addf %173, %174 : vector<8x32xf32>
    %176 = math.tanh %175 : vector<8x32xf32>
    %177 = arith.mulf %170, %176 : vector<8x32xf32>
    %c0_39 = arith.constant 0 : index
    %c4 = arith.constant 4 : index
    %c0_40 = arith.constant 0 : index
    %178 = vector.load %arg1[%c0_39, %c4, %c0_40] : memref<8x8x16xbf16, #tpu.memory_space<vmem>>, vector<8x1x16xbf16>
    %179 = vector.shape_cast %178 : vector<8x1x16xbf16> to vector<8x16xbf16>
    %180 = arith.truncf %157 : vector<8x32xf32> to vector<8x32xbf16>
    %181 = tpu.concatenate %180, %179 in 1 : vector<8x32xbf16>, vector<8x16xbf16> -> vector<8x48xbf16>
    %cst_41 = arith.constant dense<0.000000e+00> : vector<8x128xf32>
    %182 = tpu.matmul %181, %0, %cst_41 {dimension_numbers = #tpu.dot_dimension_numbers<[1], [0], [0], [1], [0, 0, 1, 1], [], []>} : vector<8x48xbf16>, vector<48x128xbf16>, vector<8x128xf32> -> vector<8x128xf32>
    %183 = arith.addf %182, %6 : vector<8x128xf32>
    %184 = arith.negf %183 : vector<8x128xf32>
    %185 = math.exp %184 : vector<8x128xf32>
    %cst_42 = arith.constant 1.000000e+00 : f32
    %186 = vector.broadcast %cst_42 : f32 to vector<8x128xf32>
    %187 = arith.addf %186, %185 : vector<8x128xf32>
    %188 = arith.divf %186, %187 : vector<8x128xf32>
    %189 = vector.extract_strided_slice %188 {offsets = [0, 0], sizes = [8, 32], strides = [1, 1]} : vector<8x128xf32> to vector<8x32xf32>
    %190 = vector.extract_strided_slice %188 {offsets = [0, 32], sizes = [8, 32], strides = [1, 1]} : vector<8x128xf32> to vector<8x32xf32>
    %191 = vector.extract_strided_slice %188 {offsets = [0, 64], sizes = [8, 32], strides = [1, 1]} : vector<8x128xf32> to vector<8x32xf32>
    %192 = vector.extract_strided_slice %183 {offsets = [0, 96], sizes = [8, 32], strides = [1, 1]} : vector<8x128xf32> to vector<8x32xf32>
    %193 = math.tanh %192 : vector<8x32xf32>
    %194 = arith.mulf %190, %155 : vector<8x32xf32>
    %195 = arith.mulf %189, %193 : vector<8x32xf32>
    %196 = arith.addf %194, %195 : vector<8x32xf32>
    %197 = math.tanh %196 : vector<8x32xf32>
    %198 = arith.mulf %191, %197 : vector<8x32xf32>
    %199 = arith.truncf %198 : vector<8x32xf32> to vector<8x32xbf16>
    %200 = arith.truncf %177 : vector<8x32xf32> to vector<8x32xbf16>
    %201 = tpu.concatenate %200, %199 in 1 : vector<8x32xbf16>, vector<8x32xbf16> -> vector<8x64xbf16>
    %cst_43 = arith.constant dense<0.000000e+00> : vector<8x128xf32>
    %202 = tpu.matmul %201, %1, %cst_43 {dimension_numbers = #tpu.dot_dimension_numbers<[1], [0], [0], [1], [0, 0, 1, 1], [], []>} : vector<8x64xbf16>, vector<64x128xbf16>, vector<8x128xf32> -> vector<8x128xf32>
    %203 = arith.addf %202, %9 : vector<8x128xf32>
    %204 = arith.negf %203 : vector<8x128xf32>
    %205 = math.exp %204 : vector<8x128xf32>
    %cst_44 = arith.constant 1.000000e+00 : f32
    %206 = vector.broadcast %cst_44 : f32 to vector<8x128xf32>
    %207 = arith.addf %206, %205 : vector<8x128xf32>
    %208 = arith.divf %206, %207 : vector<8x128xf32>
    %209 = vector.extract_strided_slice %208 {offsets = [0, 0], sizes = [8, 32], strides = [1, 1]} : vector<8x128xf32> to vector<8x32xf32>
    %210 = vector.extract_strided_slice %208 {offsets = [0, 32], sizes = [8, 32], strides = [1, 1]} : vector<8x128xf32> to vector<8x32xf32>
    %211 = vector.extract_strided_slice %208 {offsets = [0, 64], sizes = [8, 32], strides = [1, 1]} : vector<8x128xf32> to vector<8x32xf32>
    %212 = vector.extract_strided_slice %203 {offsets = [0, 96], sizes = [8, 32], strides = [1, 1]} : vector<8x128xf32> to vector<8x32xf32>
    %213 = math.tanh %212 : vector<8x32xf32>
    %214 = arith.mulf %210, %175 : vector<8x32xf32>
    %215 = arith.mulf %209, %213 : vector<8x32xf32>
    %216 = arith.addf %214, %215 : vector<8x32xf32>
    %217 = math.tanh %216 : vector<8x32xf32>
    %218 = arith.mulf %211, %217 : vector<8x32xf32>
    %c0_45 = arith.constant 0 : index
    %c5 = arith.constant 5 : index
    %c0_46 = arith.constant 0 : index
    %219 = vector.load %arg1[%c0_45, %c5, %c0_46] : memref<8x8x16xbf16, #tpu.memory_space<vmem>>, vector<8x1x16xbf16>
    %220 = vector.shape_cast %219 : vector<8x1x16xbf16> to vector<8x16xbf16>
    %221 = arith.truncf %198 : vector<8x32xf32> to vector<8x32xbf16>
    %222 = tpu.concatenate %221, %220 in 1 : vector<8x32xbf16>, vector<8x16xbf16> -> vector<8x48xbf16>
    %cst_47 = arith.constant dense<0.000000e+00> : vector<8x128xf32>
    %223 = tpu.matmul %222, %0, %cst_47 {dimension_numbers = #tpu.dot_dimension_numbers<[1], [0], [0], [1], [0, 0, 1, 1], [], []>} : vector<8x48xbf16>, vector<48x128xbf16>, vector<8x128xf32> -> vector<8x128xf32>
    %224 = arith.addf %223, %6 : vector<8x128xf32>
    %225 = arith.negf %224 : vector<8x128xf32>
    %226 = math.exp %225 : vector<8x128xf32>
    %cst_48 = arith.constant 1.000000e+00 : f32
    %227 = vector.broadcast %cst_48 : f32 to vector<8x128xf32>
    %228 = arith.addf %227, %226 : vector<8x128xf32>
    %229 = arith.divf %227, %228 : vector<8x128xf32>
    %230 = vector.extract_strided_slice %229 {offsets = [0, 0], sizes = [8, 32], strides = [1, 1]} : vector<8x128xf32> to vector<8x32xf32>
    %231 = vector.extract_strided_slice %229 {offsets = [0, 32], sizes = [8, 32], strides = [1, 1]} : vector<8x128xf32> to vector<8x32xf32>
    %232 = vector.extract_strided_slice %229 {offsets = [0, 64], sizes = [8, 32], strides = [1, 1]} : vector<8x128xf32> to vector<8x32xf32>
    %233 = vector.extract_strided_slice %224 {offsets = [0, 96], sizes = [8, 32], strides = [1, 1]} : vector<8x128xf32> to vector<8x32xf32>
    %234 = math.tanh %233 : vector<8x32xf32>
    %235 = arith.mulf %231, %196 : vector<8x32xf32>
    %236 = arith.mulf %230, %234 : vector<8x32xf32>
    %237 = arith.addf %235, %236 : vector<8x32xf32>
    %238 = math.tanh %237 : vector<8x32xf32>
    %239 = arith.mulf %232, %238 : vector<8x32xf32>
    %240 = arith.truncf %239 : vector<8x32xf32> to vector<8x32xbf16>
    %241 = arith.truncf %218 : vector<8x32xf32> to vector<8x32xbf16>
    %242 = tpu.concatenate %241, %240 in 1 : vector<8x32xbf16>, vector<8x32xbf16> -> vector<8x64xbf16>
    %cst_49 = arith.constant dense<0.000000e+00> : vector<8x128xf32>
    %243 = tpu.matmul %242, %1, %cst_49 {dimension_numbers = #tpu.dot_dimension_numbers<[1], [0], [0], [1], [0, 0, 1, 1], [], []>} : vector<8x64xbf16>, vector<64x128xbf16>, vector<8x128xf32> -> vector<8x128xf32>
    %244 = arith.addf %243, %9 : vector<8x128xf32>
    %245 = arith.negf %244 : vector<8x128xf32>
    %246 = math.exp %245 : vector<8x128xf32>
    %cst_50 = arith.constant 1.000000e+00 : f32
    %247 = vector.broadcast %cst_50 : f32 to vector<8x128xf32>
    %248 = arith.addf %247, %246 : vector<8x128xf32>
    %249 = arith.divf %247, %248 : vector<8x128xf32>
    %250 = vector.extract_strided_slice %249 {offsets = [0, 0], sizes = [8, 32], strides = [1, 1]} : vector<8x128xf32> to vector<8x32xf32>
    %251 = vector.extract_strided_slice %249 {offsets = [0, 32], sizes = [8, 32], strides = [1, 1]} : vector<8x128xf32> to vector<8x32xf32>
    %252 = vector.extract_strided_slice %249 {offsets = [0, 64], sizes = [8, 32], strides = [1, 1]} : vector<8x128xf32> to vector<8x32xf32>
    %253 = vector.extract_strided_slice %244 {offsets = [0, 96], sizes = [8, 32], strides = [1, 1]} : vector<8x128xf32> to vector<8x32xf32>
    %254 = math.tanh %253 : vector<8x32xf32>
    %255 = arith.mulf %251, %216 : vector<8x32xf32>
    %256 = arith.mulf %250, %254 : vector<8x32xf32>
    %257 = arith.addf %255, %256 : vector<8x32xf32>
    %258 = math.tanh %257 : vector<8x32xf32>
    %259 = arith.mulf %252, %258 : vector<8x32xf32>
    %c0_51 = arith.constant 0 : index
    %c6 = arith.constant 6 : index
    %c0_52 = arith.constant 0 : index
    %260 = vector.load %arg1[%c0_51, %c6, %c0_52] : memref<8x8x16xbf16, #tpu.memory_space<vmem>>, vector<8x1x16xbf16>
    %261 = vector.shape_cast %260 : vector<8x1x16xbf16> to vector<8x16xbf16>
    %262 = arith.truncf %239 : vector<8x32xf32> to vector<8x32xbf16>
    %263 = tpu.concatenate %262, %261 in 1 : vector<8x32xbf16>, vector<8x16xbf16> -> vector<8x48xbf16>
    %cst_53 = arith.constant dense<0.000000e+00> : vector<8x128xf32>
    %264 = tpu.matmul %263, %0, %cst_53 {dimension_numbers = #tpu.dot_dimension_numbers<[1], [0], [0], [1], [0, 0, 1, 1], [], []>} : vector<8x48xbf16>, vector<48x128xbf16>, vector<8x128xf32> -> vector<8x128xf32>
    %265 = arith.addf %264, %6 : vector<8x128xf32>
    %266 = arith.negf %265 : vector<8x128xf32>
    %267 = math.exp %266 : vector<8x128xf32>
    %cst_54 = arith.constant 1.000000e+00 : f32
    %268 = vector.broadcast %cst_54 : f32 to vector<8x128xf32>
    %269 = arith.addf %268, %267 : vector<8x128xf32>
    %270 = arith.divf %268, %269 : vector<8x128xf32>
    %271 = vector.extract_strided_slice %270 {offsets = [0, 0], sizes = [8, 32], strides = [1, 1]} : vector<8x128xf32> to vector<8x32xf32>
    %272 = vector.extract_strided_slice %270 {offsets = [0, 32], sizes = [8, 32], strides = [1, 1]} : vector<8x128xf32> to vector<8x32xf32>
    %273 = vector.extract_strided_slice %270 {offsets = [0, 64], sizes = [8, 32], strides = [1, 1]} : vector<8x128xf32> to vector<8x32xf32>
    %274 = vector.extract_strided_slice %265 {offsets = [0, 96], sizes = [8, 32], strides = [1, 1]} : vector<8x128xf32> to vector<8x32xf32>
    %275 = math.tanh %274 : vector<8x32xf32>
    %276 = arith.mulf %272, %237 : vector<8x32xf32>
    %277 = arith.mulf %271, %275 : vector<8x32xf32>
    %278 = arith.addf %276, %277 : vector<8x32xf32>
    %279 = math.tanh %278 : vector<8x32xf32>
    %280 = arith.mulf %273, %279 : vector<8x32xf32>
    %281 = arith.truncf %280 : vector<8x32xf32> to vector<8x32xbf16>
    %282 = arith.truncf %259 : vector<8x32xf32> to vector<8x32xbf16>
    %283 = tpu.concatenate %282, %281 in 1 : vector<8x32xbf16>, vector<8x32xbf16> -> vector<8x64xbf16>
    %cst_55 = arith.constant dense<0.000000e+00> : vector<8x128xf32>
    %284 = tpu.matmul %283, %1, %cst_55 {dimension_numbers = #tpu.dot_dimension_numbers<[1], [0], [0], [1], [0, 0, 1, 1], [], []>} : vector<8x64xbf16>, vector<64x128xbf16>, vector<8x128xf32> -> vector<8x128xf32>
    %285 = arith.addf %284, %9 : vector<8x128xf32>
    %286 = arith.negf %285 : vector<8x128xf32>
    %287 = math.exp %286 : vector<8x128xf32>
    %cst_56 = arith.constant 1.000000e+00 : f32
    %288 = vector.broadcast %cst_56 : f32 to vector<8x128xf32>
    %289 = arith.addf %288, %287 : vector<8x128xf32>
    %290 = arith.divf %288, %289 : vector<8x128xf32>
    %291 = vector.extract_strided_slice %290 {offsets = [0, 0], sizes = [8, 32], strides = [1, 1]} : vector<8x128xf32> to vector<8x32xf32>
    %292 = vector.extract_strided_slice %290 {offsets = [0, 32], sizes = [8, 32], strides = [1, 1]} : vector<8x128xf32> to vector<8x32xf32>
    %293 = vector.extract_strided_slice %290 {offsets = [0, 64], sizes = [8, 32], strides = [1, 1]} : vector<8x128xf32> to vector<8x32xf32>
    %294 = vector.extract_strided_slice %285 {offsets = [0, 96], sizes = [8, 32], strides = [1, 1]} : vector<8x128xf32> to vector<8x32xf32>
    %295 = math.tanh %294 : vector<8x32xf32>
    %296 = arith.mulf %292, %257 : vector<8x32xf32>
    %297 = arith.mulf %291, %295 : vector<8x32xf32>
    %298 = arith.addf %296, %297 : vector<8x32xf32>
    %299 = math.tanh %298 : vector<8x32xf32>
    %300 = arith.mulf %293, %299 : vector<8x32xf32>
    %c0_57 = arith.constant 0 : index
    %c7 = arith.constant 7 : index
    %c0_58 = arith.constant 0 : index
    %301 = vector.load %arg1[%c0_57, %c7, %c0_58] : memref<8x8x16xbf16, #tpu.memory_space<vmem>>, vector<8x1x16xbf16>
    %302 = vector.shape_cast %301 : vector<8x1x16xbf16> to vector<8x16xbf16>
    %303 = arith.truncf %280 : vector<8x32xf32> to vector<8x32xbf16>
    %304 = tpu.concatenate %303, %302 in 1 : vector<8x32xbf16>, vector<8x16xbf16> -> vector<8x48xbf16>
    %cst_59 = arith.constant dense<0.000000e+00> : vector<8x128xf32>
    %305 = tpu.matmul %304, %0, %cst_59 {dimension_numbers = #tpu.dot_dimension_numbers<[1], [0], [0], [1], [0, 0, 1, 1], [], []>} : vector<8x48xbf16>, vector<48x128xbf16>, vector<8x128xf32> -> vector<8x128xf32>
    %306 = arith.addf %305, %6 : vector<8x128xf32>
    %307 = arith.negf %306 : vector<8x128xf32>
    %308 = math.exp %307 : vector<8x128xf32>
    %cst_60 = arith.constant 1.000000e+00 : f32
    %309 = vector.broadcast %cst_60 : f32 to vector<8x128xf32>
    %310 = arith.addf %309, %308 : vector<8x128xf32>
    %311 = arith.divf %309, %310 : vector<8x128xf32>
    %312 = vector.extract_strided_slice %311 {offsets = [0, 0], sizes = [8, 32], strides = [1, 1]} : vector<8x128xf32> to vector<8x32xf32>
    %313 = vector.extract_strided_slice %311 {offsets = [0, 32], sizes = [8, 32], strides = [1, 1]} : vector<8x128xf32> to vector<8x32xf32>
    %314 = vector.extract_strided_slice %311 {offsets = [0, 64], sizes = [8, 32], strides = [1, 1]} : vector<8x128xf32> to vector<8x32xf32>
    %315 = vector.extract_strided_slice %306 {offsets = [0, 96], sizes = [8, 32], strides = [1, 1]} : vector<8x128xf32> to vector<8x32xf32>
    %316 = math.tanh %315 : vector<8x32xf32>
    %317 = arith.mulf %313, %278 : vector<8x32xf32>
    %318 = arith.mulf %312, %316 : vector<8x32xf32>
    %319 = arith.addf %317, %318 : vector<8x32xf32>
    %320 = math.tanh %319 : vector<8x32xf32>
    %321 = arith.mulf %314, %320 : vector<8x32xf32>
    %322 = arith.truncf %321 : vector<8x32xf32> to vector<8x32xbf16>
    %323 = arith.truncf %300 : vector<8x32xf32> to vector<8x32xbf16>
    %324 = tpu.concatenate %323, %322 in 1 : vector<8x32xbf16>, vector<8x32xbf16> -> vector<8x64xbf16>
    %cst_61 = arith.constant dense<0.000000e+00> : vector<8x128xf32>
    %325 = tpu.matmul %324, %1, %cst_61 {dimension_numbers = #tpu.dot_dimension_numbers<[1], [0], [0], [1], [0, 0, 1, 1], [], []>} : vector<8x64xbf16>, vector<64x128xbf16>, vector<8x128xf32> -> vector<8x128xf32>
    %326 = arith.addf %325, %9 : vector<8x128xf32>
    %327 = arith.negf %326 : vector<8x128xf32>
    %328 = math.exp %327 : vector<8x128xf32>
    %cst_62 = arith.constant 1.000000e+00 : f32
    %329 = vector.broadcast %cst_62 : f32 to vector<8x128xf32>
    %330 = arith.addf %329, %328 : vector<8x128xf32>
    %331 = arith.divf %329, %330 : vector<8x128xf32>
    %332 = vector.extract_strided_slice %331 {offsets = [0, 0], sizes = [8, 32], strides = [1, 1]} : vector<8x128xf32> to vector<8x32xf32>
    %333 = vector.extract_strided_slice %331 {offsets = [0, 32], sizes = [8, 32], strides = [1, 1]} : vector<8x128xf32> to vector<8x32xf32>
    %334 = vector.extract_strided_slice %331 {offsets = [0, 64], sizes = [8, 32], strides = [1, 1]} : vector<8x128xf32> to vector<8x32xf32>
    %335 = vector.extract_strided_slice %326 {offsets = [0, 96], sizes = [8, 32], strides = [1, 1]} : vector<8x128xf32> to vector<8x32xf32>
    %336 = math.tanh %335 : vector<8x32xf32>
    %337 = arith.mulf %333, %298 : vector<8x32xf32>
    %338 = arith.mulf %332, %336 : vector<8x32xf32>
    %339 = arith.addf %337, %338 : vector<8x32xf32>
    %340 = math.tanh %339 : vector<8x32xf32>
    %341 = arith.mulf %334, %340 : vector<8x32xf32>
    %342 = arith.truncf %341 : vector<8x32xf32> to vector<8x32xbf16>
    %cst_63 = arith.constant dense<0.000000e+00> : vector<8x4xf32>
    %343 = tpu.matmul %342, %2, %cst_63 {dimension_numbers = #tpu.dot_dimension_numbers<[1], [0], [0], [1], [0, 0, 1, 1], [], []>} : vector<8x32xbf16>, vector<32x4xbf16>, vector<8x4xf32> -> vector<8x4xf32>
    %344 = vector.broadcast %3 : vector<1x4xf32> to vector<8x4xf32>
    %345 = arith.addf %343, %344 : vector<8x4xf32>
    %c0_64 = arith.constant 0 : index
    %c0_65 = arith.constant 0 : index
    %346 = vector.load %arg8[%c0_64, %c0_65] : memref<8x4xf32, #tpu.memory_space<vmem>>, vector<8x4xf32>
    tpu.vector_store %arg8[%c0_64, %c0_65], %345 {strides = array<i32>} : memref<8x4xf32, #tpu.memory_space<vmem>>, vector<8x4xf32>,
    return
  }
  func.func @transform_0(%arg0: i32) -> (i32, i32, i32) {
    %c0_i32 = arith.constant 0 : i32
    %c0_i32_0 = arith.constant 0 : i32
    %c0_i32_1 = arith.constant 0 : i32
    return %arg0, %c0_i32, %c0_i32_0 : i32, i32, i32
  }
  func.func @transform_1(%arg0: i32) -> (i32, i32) {
    %c0_i32 = arith.constant 0 : i32
    %c0_i32_0 = arith.constant 0 : i32
    %c0_i32_1 = arith.constant 0 : i32
    return %c0_i32, %c0_i32_0 : i32, i32
  }
  func.func @transform_2(%arg0: i32) -> (i32, i32) {
    %c0_i32 = arith.constant 0 : i32
    %c0_i32_0 = arith.constant 0 : i32
    %c0_i32_1 = arith.constant 0 : i32
    return %c0_i32, %c0_i32_0 : i32, i32
  }
  func.func @transform_3(%arg0: i32) -> (i32, i32) {
    %c0_i32 = arith.constant 0 : i32
    %c0_i32_0 = arith.constant 0 : i32
    %c0_i32_1 = arith.constant 0 : i32
    return %c0_i32, %c0_i32_0 : i32, i32
  }
  func.func @transform_4(%arg0: i32) -> (i32, i32) {
    %c0_i32 = arith.constant 0 : i32
    %c0_i32_0 = arith.constant 0 : i32
    %c0_i32_1 = arith.constant 0 : i32
    return %c0_i32, %c0_i32_0 : i32, i32
  }
  func.func @transform_5(%arg0: i32) -> (i32, i32) {
    %c0_i32 = arith.constant 0 : i32
    %c0_i32_0 = arith.constant 0 : i32
    %c0_i32_1 = arith.constant 0 : i32
    return %c0_i32, %c0_i32_0 : i32, i32
  }
  func.func @transform_6(%arg0: i32) -> (i32, i32) {
    %c0_i32 = arith.constant 0 : i32
    %c0_i32_0 = arith.constant 0 : i32
    %c0_i32_1 = arith.constant 0 : i32
    return %c0_i32, %c0_i32_0 : i32, i32
  }
  func.func @transform_7(%arg0: i32) -> (i32, i32) {
    %c0_i32 = arith.constant 0 : i32
    %c0_i32_0 = arith.constant 0 : i32
    return %arg0, %c0_i32 : i32, i32
  }
}

</mosaic_0001>

<llo_original>
// kernel: lstm_model_forward.1
$region0: #{lstm_model_forward.1}
  #allocation0 [shape = 'u32[]', space=smem, size = 0x4, offset = 0x4, fixed_abs, tag = 'smem constant byte address 0x4 - core index']
  #allocation1 [shape = 'u32[72,128]{1,0:T(1,128)}', space=vmem, size = 0x9000, scoped, tag = 'internal scratch']
  %s0 = inlined_call_operand.vmem [shape: bf16[8,8,16], index: 0, kind: input, shape index: {}]
  %s1 = inlined_call_operand.vmem [shape: bf16[48,128], index: 1, kind: input, shape index: {}]
  %s2 = inlined_call_operand.vmem [shape: f32[1,128], index: 2, kind: input, shape index: {}]
  %s3 = inlined_call_operand.vmem [shape: bf16[64,128], index: 3, kind: input, shape index: {}]
  %s4 = inlined_call_operand.vmem [shape: f32[1,128], index: 4, kind: input, shape index: {}]
  %s5 = inlined_call_operand.vmem [shape: bf16[32,4], index: 5, kind: input, shape index: {}]
  %s6 = inlined_call_operand.vmem [shape: f32[1,4], index: 6, kind: input, shape index: {}]
  %s7 = inlined_call_operand.vmem [shape: f32[8,4], index: 7, kind: output, shape index: {}]
  %s8 = sld [smem:[#allocation0]]
  $region38: #{lstm_model_forward.1} parent=0
    _
  %s10 = ssub.s32 1, %s8
  %s11 = scalar_select 0, %s10, %s8
  // Predicated region
  $region2: #{lstm_model_forward.1} parent=0 // pred_check
    _
  $region3: #{lstm_model_forward.1} parent=0 // pred_check_branch
    %13 = sbr.rel (0) target = $region5
  $region4: #{lstm_model_forward.1} parent=0 // pred_region
    _
  $region5: #{lstm_model_forward.1} parent=0 // pred_fallthru
    _
  // Predicated region
  $region6: #{lstm_model_forward.1} parent=0 // pred_check
    _
  $region7: #{lstm_model_forward.1} parent=0 // pred_check_branch
    %15 = sbr.rel (0) target = $region9
  $region8: #{lstm_model_forward.1} parent=0 // pred_region
    _
  $region9: #{lstm_model_forward.1} parent=0 // pred_fallthru
    _
  // Predicated region
  $region10: #{lstm_model_forward.1} parent=0 // pred_check
    _
  $region11: #{lstm_model_forward.1} parent=0 // pred_check_branch
    %17 = sbr.rel (0) target = $region13
  $region12: #{lstm_model_forward.1} parent=0 // pred_region
    _
  $region13: #{lstm_model_forward.1} parent=0 // pred_fallthru
    _
  // Predicated region
  $region14: #{lstm_model_forward.1} parent=0 // pred_check
    _
  $region15: #{lstm_model_forward.1} parent=0 // pred_check_branch
    %19 = sbr.rel (0) target = $region17
  $region16: #{lstm_model_forward.1} parent=0 // pred_region
    _
  $region17: #{lstm_model_forward.1} parent=0 // pred_fallthru
    _
  // Predicated region
  $region18: #{lstm_model_forward.1} parent=0 // pred_check
    _
  $region19: #{lstm_model_forward.1} parent=0 // pred_check_branch
    %21 = sbr.rel (0) target = $region21
  $region20: #{lstm_model_forward.1} parent=0 // pred_region
    _
  $region21: #{lstm_model_forward.1} parent=0 // pred_fallthru
    _
  // Predicated region
  $region22: #{lstm_model_forward.1} parent=0 // pred_check
    _
  $region23: #{lstm_model_forward.1} parent=0 // pred_check_branch
    %23 = sbr.rel (0) target = $region25
  $region24: #{lstm_model_forward.1} parent=0 // pred_region
    _
  $region25: #{lstm_model_forward.1} parent=0 // pred_fallthru
    _
  // Predicated region
  $region26: #{lstm_model_forward.1} parent=0 // pred_check
    _
  $region27: #{lstm_model_forward.1} parent=0 // pred_check_branch
    %25 = sbr.rel (0) target = $region29
  $region28: #{lstm_model_forward.1} parent=0 // pred_region
    _
  $region29: #{lstm_model_forward.1} parent=0 // pred_fallthru
    _
  %v27 = vld [vmem:[%s1] sm:$0xf]
  %v28 = vld [vmem:[%s1 + $0x4] sm:$0xf]
  %v29 = vld [vmem:[%s1 + $0x8] sm:$0xf]
  %v30 = vld [vmem:[%s1 + $0xc] sm:$0xf]
  %v31 = vld [vmem:[%s1 + $0x10] sm:$0xf]
  %v32 = vld [vmem:[%s1 + $0x14] sm:$0xf]
  %v33 = vld [vmem:[%s3] sm:$0xf]
  %v34 = vld [vmem:[%s3 + $0x4] sm:$0xf]
  %v35 = vld [vmem:[%s3 + $0x8] sm:$0xf]
  %v36 = vld [vmem:[%s3 + $0xc] sm:$0xf]
  %v37 = vld [vmem:[%s3 + $0x10] sm:$0xf]
  %v38 = vld [vmem:[%s3 + $0x14] sm:$0xf]
  %v39 = vld [vmem:[%s3 + $0x18] sm:$0xf]
  %v40 = vld [vmem:[%s3 + $0x1c] sm:$0xf]
  %v41 = vld [vmem:[%s5] sm:$0xf]
  %v42 = vld [vmem:[%s5 + $0x4] sm:$0xf]
  %v43 = vld [vmem:[%s5 + $0x8] sm:$0xf]
  %v44 = vld [vmem:[%s5 + $0xc] sm:$0xf]
  %v45 = vld [vmem:[%s6] sm:$0x1]
  %v46 = vld [vmem:[%s2] sm:$0x1]
  %v48 = vperm.slane %v46, 0
  %v50 = vld [vmem:[%s4] sm:$0x1]
  %v52 = vperm.slane %v50, 0
  %v54 = vld [vmem:[%s0] sm:$0x1]
  %v55 = vld [vmem:[%s0 + $0x4] sm:$0x1]
  %v56 = vld [vmem:[%s0 + $0x8] sm:$0x1]
  %v57 = vld [vmem:[%s0 + $0xc] sm:$0x1]
  %v58 = vld [vmem:[%s0 + $0x10] sm:$0x1]
  %v59 = vld [vmem:[%s0 + $0x14] sm:$0x1]
  %v60 = vld [vmem:[%s0 + $0x18] sm:$0x1]
  %v61 = vld [vmem:[%s0 + $0x1c] sm:$0x1]
  %v70 = vunpack.c.l.b16 %v54
  %v71 = vunpack.c.l.b16 %v55
  %v72 = vunpack.c.l.b16 %v56
  %v73 = vunpack.c.l.b16 %v57
  %v74 = vunpack.c.l.b16 %v58
  %v75 = vunpack.c.l.b16 %v59
  %v76 = vunpack.c.l.b16 %v60
  %v77 = vunpack.c.l.b16 %v61
  %v78 = vpack.c.b16 %v70, %v70
  %v79 = vpack.c.b16 %v71, %v71
  %v80 = vpack.c.b16 %v72, %v72
  %v81 = vpack.c.b16 %v73, %v73
  %v82 = vpack.c.b16 %v74, %v74
  %v83 = vpack.c.b16 %v75, %v75
  %v84 = vpack.c.b16 %v76, %v76
  %v85 = vpack.c.b16 %v77, %v77
  %v86 = vunpack.c.l.b16 %v78
  %v87 = vunpack.c.l.b16 %v79
  %v88 = vunpack.c.l.b16 %v80
  %v89 = vunpack.c.l.b16 %v81
  %v90 = vunpack.c.l.b16 %v82
  %v91 = vunpack.c.l.b16 %v83
  %v92 = vunpack.c.l.b16 %v84
  %v93 = vunpack.c.l.b16 %v85
  %v94 = vrot.slane %v87, 7
  %vm95 = vcmask 1041409
  %v96 = vsel %vm95, %v94, %v86
  %v97 = vrot.slane %v88, 6
  %vm98 = vcmask 1042434
  %v99 = vsel %vm98, %v97, %v96
  %v100 = vrot.slane %v89, 5
  %vm101 = vcmask 1043459
  %v102 = vsel %vm101, %v100, %v99
  %v103 = vrot.slane %v90, 4
  %vm104 = vcmask 1044484
  %v105 = vsel %vm104, %v103, %v102
  %v106 = vrot.slane %v91, 3
  %vm107 = vcmask 1045509
  %v108 = vsel %vm107, %v106, %v105
  %v109 = vrot.slane %v92, 2
  %vm110 = vcmask 1046534
  %v111 = vsel %vm110, %v109, %v108
  %v112 = vrot.slane %v93, 1
  %vm113 = vcmask 1047559
  %v114 = vsel %vm113, %v112, %v111
  %v115 = vpack.c.b16 %v114, %v114
  %116 = vrot.lane.b32.xlu0 %v115, 32
  %v117 = vpop.permute.xlu0 %116
  %vm118 = vcmask 261120
  %v121 = vsel %vm118, 0, %v117
  %v128 = vunpack.c.l.b16 %v27
  %v129 = vunpack.c.l.b16 %v28
  %v130 = vunpack.c.l.b16 %v29
  %v131 = vunpack.c.l.b16 %v30
  %v132 = vunpack.c.l.b16 %v31
  %v133 = vunpack.c.l.b16 %v32
  %v134 = vpack.c.b16 %v129, %v128
  %v135 = vpack.c.b16 %v131, %v130
  %v136 = vpack.c.b16 %v133, %v132
  %vm140 = vcmask 392192
  %v141 = vsel %vm140, %v121, 0
  %143 = vmatpush.bf16.msra.mxu0 0
  %144 = vmatpush.bf16.msra.mxu0 0
  %145 = vmatpush.bf16.msra.mxu0 0
  %146 = vmatpush.bf16.msra.mxu0 0
  %147 = vmatpush.bf16.msra.mxu0 0
  %148 = vmatpush.bf16.msra.mxu0 %v136
  %149 = vmatpush.bf16.msra.mxu0 %v135
  %150 = vmatpush.bf16.msra.mxu0 %v134
  %151 = vmatmul.bf16.gmra.mxu0 %v141
  %v152 = vpop.f32.mrf.mxu0
  %v153 = vadd.f32 %v48, %v152
  %v154 = vpop.f32.mrf.mxu0
  %155 = vdwg.mxu0
  %v156 = vxor.u32 %v153, 2147483648
  %v157 = vmul.f32 %v156, 1.442695
  %v158 = vpow.pop %v157
  %v159 = vadd.f32 %v158, 1.0
  %v160 = vrcp.pop %v159
  %v161 = vmul.f32 %v159, %v160
  %v162 = vsub.f32 1.0, %v161
  %v163 = vmul.f32 %v160, %v162
  %v164 = vadd.f32 %v160, %v163
  %vm165 = vweird.f32 %v159
  %vm166 = vweird.f32 %v160
  %vm167 = vmor %vm165, %vm166
  %v168 = vsel %vm167, %v160, %v164
  %v169 = vand.u32 2147483647, %v159
  %vm170 = vcmp.eq.f32.partialorder %v169, 8.507059e+37
  %v171 = vand.u32 %v159, 2147483648
  %v172 = vor.u32 1.1754944e-38, %v171
  %v173 = vsel %vm170, %v172, %v168
  %v174 = vmul.f32 1.0, %v173
  %v175 = vtanh.pop %v153
  %v176 = vmul.f32 %v174, 0.0
  %178 = vrot.lane.b32.xlu0 %v175, 32
  %v179 = vpop.permute.xlu0 %178
  %v181 = vmul.f32 %v174, %v179
  %183 = vrot.lane.b32.xlu0 %v181, 32
  %v184 = vpop.permute.xlu0 %183
  %v186 = vadd.f32 %v176, %v184
  %v187 = vtanh.pop %v186
  %189 = vrot.lane.b32.xlu0 %v187, 32
  %v190 = vpop.permute.xlu0 %189
  %v192 = vmul.f32 %v174, %v190
  %v193 = vpack.c.bf16 %v192, %v192
  %v195 = vunpack.c.l.b16 %v193
  %v196 = vpack.c.b16 %v195, %v195
  %197 = vrot.lane.b32.xlu0 %v196, 96
  %v198 = vpop.permute.xlu0 %197
  %v200 = vsel %vm118, 0, %v198
  %v209 = vunpack.c.l.b16 %v33
  %v210 = vunpack.c.l.b16 %v34
  %v211 = vunpack.c.l.b16 %v35
  %v212 = vunpack.c.l.b16 %v36
  %v213 = vunpack.c.l.b16 %v37
  %v214 = vunpack.c.l.b16 %v38
  %v215 = vunpack.c.l.b16 %v39
  %v216 = vunpack.c.l.b16 %v40
  %v217 = vpack.c.b16 %v210, %v209
  %v218 = vpack.c.b16 %v212, %v211
  %v219 = vpack.c.b16 %v214, %v213
  %v220 = vpack.c.b16 %v216, %v215
  %vm225 = vcmask 523264
  %v226 = vsel %vm225, %v200, 0
  %228 = vmatpush.bf16.msra.mxu0 0
  %229 = vmatpush.bf16.msra.mxu0 0
  %230 = vmatpush.bf16.msra.mxu0 0
  %231 = vmatpush.bf16.msra.mxu0 0
  %232 = vmatpush.bf16.msra.mxu0 %v220
  %233 = vmatpush.bf16.msra.mxu0 %v219
  %234 = vmatpush.bf16.msra.mxu0 %v218
  %235 = vmatpush.bf16.msra.mxu0 %v217
  %236 = vmatmul.bf16.gmra.mxu0 %v226
  %v237 = vpop.f32.mrf.mxu0
  %v238 = vadd.f32 %v52, %v237
  %v239 = vpop.f32.mrf.mxu0
  %240 = vdwg.mxu0
  %v241 = vxor.u32 %v238, 2147483648
  %v242 = vmul.f32 %v241, 1.442695
  %v243 = vpow.pop %v242
  %v244 = vadd.f32 %v243, 1.0
  %v245 = vrcp.pop %v244
  %v246 = vmul.f32 %v244, %v245
  %v247 = vsub.f32 1.0, %v246
  %v248 = vmul.f32 %v245, %v247
  %v249 = vadd.f32 %v245, %v248
  %vm250 = vweird.f32 %v244
  %vm251 = vweird.f32 %v245
  %vm252 = vmor %vm250, %vm251
  %v253 = vsel %vm252, %v245, %v249
  %v254 = vand.u32 2147483647, %v244
  %vm255 = vcmp.eq.f32.partialorder %v254, 8.507059e+37
  %v256 = vand.u32 %v244, 2147483648
  %v257 = vor.u32 1.1754944e-38, %v256
  %v258 = vsel %vm255, %v257, %v253
  %v259 = vmul.f32 1.0, %v258
  %v260 = vtanh.pop %v238
  %v261 = vmul.f32 %v259, 0.0
  %263 = vrot.lane.b32.xlu0 %v260, 32
  %v264 = vpop.permute.xlu0 %263
  %v266 = vmul.f32 %v259, %v264
  %268 = vrot.lane.b32.xlu0 %v266, 32
  %v269 = vpop.permute.xlu0 %268
  %v271 = vadd.f32 %v261, %v269
  %v272 = vtanh.pop %v271
  %274 = vrot.lane.b32.xlu0 %v272, 32
  %v275 = vpop.permute.xlu0 %274
  %v277 = vmul.f32 %v259, %v275
  %278 = vrot.lane.b32.xlu0 %v196, 64
  %v279 = vpop.permute.xlu0 %278
  %v280 = vrot.slane %v86, 1
  %v281 = vsel %vm95, %v87, %v280
  %v282 = vrot.slane %v88, 7
  %v283 = vsel %vm98, %v282, %v281
  %v284 = vrot.slane %v89, 6
  %v285 = vsel %vm101, %v284, %v283
  %v286 = vrot.slane %v90, 5
  %v287 = vsel %vm104, %v286, %v285
  %v288 = vrot.slane %v91, 4
  %v289 = vsel %vm107, %v288, %v287
  %v290 = vrot.slane %v92, 3
  %v291 = vsel %vm110, %v290, %v289
  %v292 = vrot.slane %v93, 2
  %v293 = vsel %vm113, %v292, %v291
  %v294 = vpack.c.b16 %v293, %v293
  %295 = vrot.lane.b32.xlu0 %v294, 32
  %v296 = vpop.permute.xlu0 %295
  %v299 = vsel %vm118, %v279, %v296
  %v300 = vsel %vm140, %v299, 0
  %302 = vmatpush.bf16.msra.mxu0 0
  %303 = vmatpush.bf16.msra.mxu0 0
  %304 = vmatpush.bf16.msra.mxu0 0
  %305 = vmatpush.bf16.msra.mxu0 0
  %306 = vmatpush.bf16.msra.mxu0 0
  %307 = vmatpush.bf16.msra.mxu0 %v136
  %308 = vmatpush.bf16.msra.mxu0 %v135
  %309 = vmatpush.bf16.msra.mxu0 %v134
  %310 = vmatmul.bf16.gmra.mxu0 %v300
  %v311 = vpop.f32.mrf.mxu0
  %v312 = vadd.f32 %v48, %v311
  %v313 = vpop.f32.mrf.mxu0
  %314 = vdwg.mxu0
  %v315 = vxor.u32 %v312, 2147483648
  %v316 = vmul.f32 %v315, 1.442695
  %v317 = vpow.pop %v316
  %v318 = vadd.f32 %v317, 1.0
  %v319 = vrcp.pop %v318
  %v320 = vmul.f32 %v318, %v319
  %v321 = vsub.f32 1.0, %v320
  %v322 = vmul.f32 %v319, %v321
  %v323 = vadd.f32 %v319, %v322
  %vm324 = vweird.f32 %v318
  %vm325 = vweird.f32 %v319
  %vm326 = vmor %vm324, %vm325
  %v327 = vsel %vm326, %v319, %v323
  %v328 = vand.u32 2147483647, %v318
  %vm329 = vcmp.eq.f32.partialorder %v328, 8.507059e+37
  %v330 = vand.u32 %v318, 2147483648
  %v331 = vor.u32 1.1754944e-38, %v330
  %v332 = vsel %vm329, %v331, %v327
  %v333 = vmul.f32 1.0, %v332
  %v334 = vtanh.pop %v312
  %v335 = vmul.f32 %v333, %v186
  %337 = vrot.lane.b32.xlu0 %v334, 32
  %v338 = vpop.permute.xlu0 %337
  %v340 = vmul.f32 %v333, %v338
  %342 = vrot.lane.b32.xlu0 %v340, 32
  %v343 = vpop.permute.xlu0 %342
  %v345 = vadd.f32 %v335, %v343
  %v346 = vtanh.pop %v345
  %348 = vrot.lane.b32.xlu0 %v346, 32
  %v349 = vpop.permute.xlu0 %348
  %v351 = vmul.f32 %v333, %v349
  %v352 = vpack.c.bf16 %v351, %v351
  %v353 = vpack.c.bf16 %v277, %v277
  %v355 = vunpack.c.l.b16 %v353
  %v356 = vpack.c.b16 %v355, %v355
  %357 = vrot.lane.b32.xlu0 %v356, 64
  %v358 = vpop.permute.xlu0 %357
  %v360 = vunpack.c.l.b16 %v352
  %v361 = vpack.c.b16 %v360, %v360
  %362 = vrot.lane.b32.xlu0 %v361, 96
  %v363 = vpop.permute.xlu0 %362
  %v366 = vsel %vm118, %v358, %v363
  %v367 = vsel %vm225, %v366, 0
  %369 = vmatpush.bf16.msra.mxu0 0
  %370 = vmatpush.bf16.msra.mxu0 0
  %371 = vmatpush.bf16.msra.mxu0 0
  %372 = vmatpush.bf16.msra.mxu0 0
  %373 = vmatpush.bf16.msra.mxu0 %v220
  %374 = vmatpush.bf16.msra.mxu0 %v219
  %375 = vmatpush.bf16.msra.mxu0 %v218
  %376 = vmatpush.bf16.msra.mxu0 %v217
  %377 = vmatmul.bf16.gmra.mxu0 %v367
  %v378 = vpop.f32.mrf.mxu0
  %v379 = vadd.f32 %v52, %v378
  %v380 = vpop.f32.mrf.mxu0
  %381 = vdwg.mxu0
  %v382 = vxor.u32 %v379, 2147483648
  %v383 = vmul.f32 %v382, 1.442695
  %v384 = vpow.pop %v383
  %v385 = vadd.f32 %v384, 1.0
  %v386 = vrcp.pop %v385
  %v387 = vmul.f32 %v385, %v386
  %v388 = vsub.f32 1.0, %v387
  %v389 = vmul.f32 %v386, %v388
  %v390 = vadd.f32 %v386, %v389
  %vm391 = vweird.f32 %v385
  %vm392 = vweird.f32 %v386
  %vm393 = vmor %vm391, %vm392
  %v394 = vsel %vm393, %v386, %v390
  %v395 = vand.u32 2147483647, %v385
  %vm396 = vcmp.eq.f32.partialorder %v395, 8.507059e+37
  %v397 = vand.u32 %v385, 2147483648
  %v398 = vor.u32 1.1754944e-38, %v397
  %v399 = vsel %vm396, %v398, %v394
  %v400 = vmul.f32 1.0, %v399
  %v401 = vtanh.pop %v379
  %v402 = vmul.f32 %v400, %v271
  %404 = vrot.lane.b32.xlu0 %v401, 32
  %v405 = vpop.permute.xlu0 %404
  %v407 = vmul.f32 %v400, %v405
  %409 = vrot.lane.b32.xlu0 %v407, 32
  %v410 = vpop.permute.xlu0 %409
  %v412 = vadd.f32 %v402, %v410
  %v413 = vtanh.pop %v412
  %415 = vrot.lane.b32.xlu0 %v413, 32
  %v416 = vpop.permute.xlu0 %415
  %v418 = vmul.f32 %v400, %v416
  %v419 = vld [vmem:[%s0] sm:$0x2]
  %v420 = vld [vmem:[%s0 + $0x4] sm:$0x2]
  %v421 = vld [vmem:[%s0 + $0x8] sm:$0x2]
  %v422 = vld [vmem:[%s0 + $0xc] sm:$0x2]
  %v423 = vld [vmem:[%s0 + $0x10] sm:$0x2]
  %v424 = vld [vmem:[%s0 + $0x14] sm:$0x2]
  %v425 = vld [vmem:[%s0 + $0x18] sm:$0x2]
  %v426 = vld [vmem:[%s0 + $0x1c] sm:$0x2]
  %427 = vrot.lane.b32.xlu0 %v361, 64
  %v428 = vpop.permute.xlu0 %427
  %v437 = vunpack.c.l.b16 %v419
  %v438 = vunpack.c.l.b16 %v420
  %v439 = vunpack.c.l.b16 %v421
  %v440 = vunpack.c.l.b16 %v422
  %v441 = vunpack.c.l.b16 %v423
  %v442 = vunpack.c.l.b16 %v424
  %v443 = vunpack.c.l.b16 %v425
  %v444 = vunpack.c.l.b16 %v426
  %v445 = vpack.c.b16 %v437, %v437
  %v446 = vpack.c.b16 %v438, %v438
  %v447 = vpack.c.b16 %v439, %v439
  %v448 = vpack.c.b16 %v440, %v440
  %v449 = vpack.c.b16 %v441, %v441
  %v450 = vpack.c.b16 %v442, %v442
  %v451 = vpack.c.b16 %v443, %v443
  %v452 = vpack.c.b16 %v444, %v444
  %v453 = vunpack.c.l.b16 %v445
  %v454 = vunpack.c.l.b16 %v446
  %v455 = vunpack.c.l.b16 %v447
  %v456 = vunpack.c.l.b16 %v448
  %v457 = vunpack.c.l.b16 %v449
  %v458 = vunpack.c.l.b16 %v450
  %v459 = vunpack.c.l.b16 %v451
  %v460 = vunpack.c.l.b16 %v452
  %v461 = vrot.slane %v453, 2
  %v462 = vrot.slane %v454, 1
  %v463 = vsel %vm95, %v462, %v461
  %v464 = vsel %vm98, %v455, %v463
  %v465 = vrot.slane %v456, 7
  %v466 = vsel %vm101, %v465, %v464
  %v467 = vrot.slane %v457, 6
  %v468 = vsel %vm104, %v467, %v466
  %v469 = vrot.slane %v458, 5
  %v470 = vsel %vm107, %v469, %v468
  %v471 = vrot.slane %v459, 4
  %v472 = vsel %vm110, %v471, %v470
  %v473 = vrot.slane %v460, 3
  %v474 = vsel %vm113, %v473, %v472
  %v475 = vpack.c.b16 %v474, %v474
  %476 = vrot.lane.b32.xlu0 %v475, 32
  %v477 = vpop.permute.xlu0 %476
  %v480 = vsel %vm118, %v428, %v477
  %v481 = vsel %vm140, %v480, 0
  %483 = vmatpush.bf16.msra.mxu0 0
  %484 = vmatpush.bf16.msra.mxu0 0
  %485 = vmatpush.bf16.msra.mxu0 0
  %486 = vmatpush.bf16.msra.mxu0 0
  %487 = vmatpush.bf16.msra.mxu0 0
  %488 = vmatpush.bf16.msra.mxu0 %v136
  %489 = vmatpush.bf16.msra.mxu0 %v135
  %490 = vmatpush.bf16.msra.mxu0 %v134
  %491 = vmatmul.bf16.gmra.mxu0 %v481
  %v492 = vpop.f32.mrf.mxu0
  %v493 = vadd.f32 %v48, %v492
  %v494 = vpop.f32.mrf.mxu0
  %495 = vdwg.mxu0
  %v496 = vxor.u32 %v493, 2147483648
  %v497 = vmul.f32 %v496, 1.442695
  %v498 = vpow.pop %v497
  %v499 = vadd.f32 %v498, 1.0
  %v500 = vrcp.pop %v499
  %v501 = vmul.f32 %v499, %v500
  %v502 = vsub.f32 1.0, %v501
  %v503 = vmul.f32 %v500, %v502
  %v504 = vadd.f32 %v500, %v503
  %vm505 = vweird.f32 %v499
  %vm506 = vweird.f32 %v500
  %vm507 = vmor %vm505, %vm506
  %v508 = vsel %vm507, %v500, %v504
  %v509 = vand.u32 2147483647, %v499
  %vm510 = vcmp.eq.f32.partialorder %v509, 8.507059e+37
  %v511 = vand.u32 %v499, 2147483648
  %v512 = vor.u32 1.1754944e-38, %v511
  %v513 = vsel %vm510, %v512, %v508
  %v514 = vmul.f32 1.0, %v513
  %v515 = vtanh.pop %v493
  %v516 = vmul.f32 %v514, %v345
  %518 = vrot.lane.b32.xlu0 %v515, 32
  %v519 = vpop.permute.xlu0 %518
  %v521 = vmul.f32 %v514, %v519
  %523 = vrot.lane.b32.xlu0 %v521, 32
  %v524 = vpop.permute.xlu0 %523
  %v526 = vadd.f32 %v516, %v524
  %v527 = vtanh.pop %v526
  %529 = vrot.lane.b32.xlu0 %v527, 32
  %v530 = vpop.permute.xlu0 %529
  %v532 = vmul.f32 %v514, %v530
  %v533 = vpack.c.bf16 %v532, %v532
  %v534 = vpack.c.bf16 %v418, %v418
  %v536 = vunpack.c.l.b16 %v534
  %v537 = vpack.c.b16 %v536, %v536
  %538 = vrot.lane.b32.xlu0 %v537, 64
  %v539 = vpop.permute.xlu0 %538
  %v541 = vunpack.c.l.b16 %v533
  %v542 = vpack.c.b16 %v541, %v541
  %543 = vrot.lane.b32.xlu0 %v542, 96
  %v544 = vpop.permute.xlu0 %543
  %v547 = vsel %vm118, %v539, %v544
  %v548 = vsel %vm225, %v547, 0
  %550 = vmatpush.bf16.msra.mxu0 0
  %551 = vmatpush.bf16.msra.mxu0 0
  %552 = vmatpush.bf16.msra.mxu0 0
  %553 = vmatpush.bf16.msra.mxu0 0
  %554 = vmatpush.bf16.msra.mxu0 %v220
  %555 = vmatpush.bf16.msra.mxu0 %v219
  %556 = vmatpush.bf16.msra.mxu0 %v218
  %557 = vmatpush.bf16.msra.mxu0 %v217
  %558 = vmatmul.bf16.gmra.mxu0 %v548
  %v559 = vpop.f32.mrf.mxu0
  %v560 = vadd.f32 %v52, %v559
  %v561 = vpop.f32.mrf.mxu0
  %562 = vdwg.mxu0
  %v563 = vxor.u32 %v560, 2147483648
  %v564 = vmul.f32 %v563, 1.442695
  %v565 = vpow.pop %v564
  %v566 = vadd.f32 %v565, 1.0
  %v567 = vrcp.pop %v566
  %v568 = vmul.f32 %v566, %v567
  %v569 = vsub.f32 1.0, %v568
  %v570 = vmul.f32 %v567, %v569
  %v571 = vadd.f32 %v567, %v570
  %vm572 = vweird.f32 %v566
  %vm573 = vweird.f32 %v567
  %vm574 = vmor %vm572, %vm573
  %v575 = vsel %vm574, %v567, %v571
  %v576 = vand.u32 2147483647, %v566
  %vm577 = vcmp.eq.f32.partialorder %v576, 8.507059e+37
  %v578 = vand.u32 %v566, 2147483648
  %v579 = vor.u32 1.1754944e-38, %v578
  %v580 = vsel %vm577, %v579, %v575
  %v581 = vmul.f32 1.0, %v580
  %v582 = vtanh.pop %v560
  %v583 = vmul.f32 %v581, %v412
  %585 = vrot.lane.b32.xlu0 %v582, 32
  %v586 = vpop.permute.xlu0 %585
  %v588 = vmul.f32 %v581, %v586
  %590 = vrot.lane.b32.xlu0 %v588, 32
  %v591 = vpop.permute.xlu0 %590
  %v593 = vadd.f32 %v583, %v591
  %v594 = vtanh.pop %v593
  %596 = vrot.lane.b32.xlu0 %v594, 32
  %v597 = vpop.permute.xlu0 %596
  %v599 = vmul.f32 %v581, %v597
  %600 = vrot.lane.b32.xlu0 %v542, 64
  %v601 = vpop.permute.xlu0 %600
  %v602 = vrot.slane %v453, 3
  %v603 = vrot.slane %v454, 2
  %v604 = vsel %vm95, %v603, %v602
  %v605 = vrot.slane %v455, 1
  %v606 = vsel %vm98, %v605, %v604
  %v607 = vsel %vm101, %v456, %v606
  %v608 = vrot.slane %v457, 7
  %v609 = vsel %vm104, %v608, %v607
  %v610 = vrot.slane %v458, 6
  %v611 = vsel %vm107, %v610, %v609
  %v612 = vrot.slane %v459, 5
  %v613 = vsel %vm110, %v612, %v611
  %v614 = vrot.slane %v460, 4
  %v615 = vsel %vm113, %v614, %v613
  %v616 = vpack.c.b16 %v615, %v615
  %617 = vrot.lane.b32.xlu0 %v616, 32
  %v618 = vpop.permute.xlu0 %617
  %v621 = vsel %vm118, %v601, %v618
  %v622 = vsel %vm140, %v621, 0
  %624 = vmatpush.bf16.msra.mxu0 0
  %625 = vmatpush.bf16.msra.mxu0 0
  %626 = vmatpush.bf16.msra.mxu0 0
  %627 = vmatpush.bf16.msra.mxu0 0
  %628 = vmatpush.bf16.msra.mxu0 0
  %629 = vmatpush.bf16.msra.mxu0 %v136
  %630 = vmatpush.bf16.msra.mxu0 %v135
  %631 = vmatpush.bf16.msra.mxu0 %v134
  %632 = vmatmul.bf16.gmra.mxu0 %v622
  %v633 = vpop.f32.mrf.mxu0
  %v634 = vadd.f32 %v48, %v633
  %v635 = vpop.f32.mrf.mxu0
  %636 = vdwg.mxu0
  %v637 = vxor.u32 %v634, 2147483648
  %v638 = vmul.f32 %v637, 1.442695
  %v639 = vpow.pop %v638
  %v640 = vadd.f32 %v639, 1.0
  %v641 = vrcp.pop %v640
  %v642 = vmul.f32 %v640, %v641
  %v643 = vsub.f32 1.0, %v642
  %v644 = vmul.f32 %v641, %v643
  %v645 = vadd.f32 %v641, %v644
  %vm646 = vweird.f32 %v640
  %vm647 = vweird.f32 %v641
  %vm648 = vmor %vm646, %vm647
  %v649 = vsel %vm648, %v641, %v645
  %v650 = vand.u32 2147483647, %v640
  %vm651 = vcmp.eq.f32.partialorder %v650, 8.507059e+37
  %v652 = vand.u32 %v640, 2147483648
  %v653 = vor.u32 1.1754944e-38, %v652
  %v654 = vsel %vm651, %v653, %v649
  %v655 = vmul.f32 1.0, %v654
  %v656 = vtanh.pop %v634
  %v657 = vmul.f32 %v655, %v526
  %659 = vrot.lane.b32.xlu0 %v656, 32
  %v660 = vpop.permute.xlu0 %659
  %v662 = vmul.f32 %v655, %v660
  %664 = vrot.lane.b32.xlu0 %v662, 32
  %v665 = vpop.permute.xlu0 %664
  %v667 = vadd.f32 %v657, %v665
  %v668 = vtanh.pop %v667
  %670 = vrot.lane.b32.xlu0 %v668, 32
  %v671 = vpop.permute.xlu0 %670
  %v673 = vmul.f32 %v655, %v671
  %v674 = vpack.c.bf16 %v673, %v673
  %v675 = vpack.c.bf16 %v599, %v599
  %v677 = vunpack.c.l.b16 %v675
  %v678 = vpack.c.b16 %v677, %v677
  %679 = vrot.lane.b32.xlu0 %v678, 64
  %v680 = vpop.permute.xlu0 %679
  %v682 = vunpack.c.l.b16 %v674
  %v683 = vpack.c.b16 %v682, %v682
  %684 = vrot.lane.b32.xlu0 %v683, 96
  %v685 = vpop.permute.xlu0 %684
  %v688 = vsel %vm118, %v680, %v685
  %v689 = vsel %vm225, %v688, 0
  %691 = vmatpush.bf16.msra.mxu0 0
  %692 = vmatpush.bf16.msra.mxu0 0
  %693 = vmatpush.bf16.msra.mxu0 0
  %694 = vmatpush.bf16.msra.mxu0 0
  %695 = vmatpush.bf16.msra.mxu0 %v220
  %696 = vmatpush.bf16.msra.mxu0 %v219
  %697 = vmatpush.bf16.msra.mxu0 %v218
  %698 = vmatpush.bf16.msra.mxu0 %v217
  %699 = vmatmul.bf16.gmra.mxu0 %v689
  %v700 = vpop.f32.mrf.mxu0
  %v701 = vadd.f32 %v52, %v700
  %v702 = vpop.f32.mrf.mxu0
  %703 = vdwg.mxu0
  %v704 = vxor.u32 %v701, 2147483648
  %v705 = vmul.f32 %v704, 1.442695
  %v706 = vpow.pop %v705
  %v707 = vadd.f32 %v706, 1.0
  %v708 = vrcp.pop %v707
  %v709 = vmul.f32 %v707, %v708
  %v710 = vsub.f32 1.0, %v709
  %v711 = vmul.f32 %v708, %v710
  %v712 = vadd.f32 %v708, %v711
  %vm713 = vweird.f32 %v707
  %vm714 = vweird.f32 %v708
  %vm715 = vmor %vm713, %vm714
  %v716 = vsel %vm715, %v708, %v712
  %v717 = vand.u32 2147483647, %v707
  %vm718 = vcmp.eq.f32.partialorder %v717, 8.507059e+37
  %v719 = vand.u32 %v707, 2147483648
  %v720 = vor.u32 1.1754944e-38, %v719
  %v721 = vsel %vm718, %v720, %v716
  %v722 = vmul.f32 1.0, %v721
  %v723 = vtanh.pop %v701
  %v724 = vmul.f32 %v722, %v593
  %726 = vrot.lane.b32.xlu0 %v723, 32
  %v727 = vpop.permute.xlu0 %726
  %v729 = vmul.f32 %v722, %v727
  %731 = vrot.lane.b32.xlu0 %v729, 32
  %v732 = vpop.permute.xlu0 %731
  %v734 = vadd.f32 %v724, %v732
  %v735 = vtanh.pop %v734
  %737 = vrot.lane.b32.xlu0 %v735, 32
  %v738 = vpop.permute.xlu0 %737
  %v740 = vmul.f32 %v722, %v738
  %v741 = vld [vmem:[%s0] sm:$0x4]
  %v742 = vld [vmem:[%s0 + $0x4] sm:$0x4]
  %v743 = vld [vmem:[%s0 + $0x8] sm:$0x4]
  %v744 = vld [vmem:[%s0 + $0xc] sm:$0x4]
  %v745 = vld [vmem:[%s0 + $0x10] sm:$0x4]
  %v746 = vld [vmem:[%s0 + $0x14] sm:$0x4]
  %v747 = vld [vmem:[%s0 + $0x18] sm:$0x4]
  %v748 = vld [vmem:[%s0 + $0x1c] sm:$0x4]
  %749 = vrot.lane.b32.xlu0 %v683, 64
  %v750 = vpop.permute.xlu0 %749
  %v759 = vunpack.c.l.b16 %v741
  %v760 = vunpack.c.l.b16 %v742
  %v761 = vunpack.c.l.b16 %v743
  %v762 = vunpack.c.l.b16 %v744
  %v763 = vunpack.c.l.b16 %v745
  %v764 = vunpack.c.l.b16 %v746
  %v765 = vunpack.c.l.b16 %v747
  %v766 = vunpack.c.l.b16 %v748
  %v767 = vpack.c.b16 %v759, %v759
  %v768 = vpack.c.b16 %v760, %v760
  %v769 = vpack.c.b16 %v761, %v761
  %v770 = vpack.c.b16 %v762, %v762
  %v771 = vpack.c.b16 %v763, %v763
  %v772 = vpack.c.b16 %v764, %v764
  %v773 = vpack.c.b16 %v765, %v765
  %v774 = vpack.c.b16 %v766, %v766
  %v775 = vunpack.c.l.b16 %v767
  %v776 = vunpack.c.l.b16 %v768
  %v777 = vunpack.c.l.b16 %v769
  %v778 = vunpack.c.l.b16 %v770
  %v779 = vunpack.c.l.b16 %v771
  %v780 = vunpack.c.l.b16 %v772
  %v781 = vunpack.c.l.b16 %v773
  %v782 = vunpack.c.l.b16 %v774
  %v783 = vrot.slane %v775, 4
  %v784 = vrot.slane %v776, 3
  %v785 = vsel %vm95, %v784, %v783
  %v786 = vrot.slane %v777, 2
  %v787 = vsel %vm98, %v786, %v785
  %v788 = vrot.slane %v778, 1
  %v789 = vsel %vm101, %v788, %v787
  %v790 = vsel %vm104, %v779, %v789
  %v791 = vrot.slane %v780, 7
  %v792 = vsel %vm107, %v791, %v790
  %v793 = vrot.slane %v781, 6
  %v794 = vsel %vm110, %v793, %v792
  %v795 = vrot.slane %v782, 5
  %v796 = vsel %vm113, %v795, %v794
  %v797 = vpack.c.b16 %v796, %v796
  %798 = vrot.lane.b32.xlu0 %v797, 32
  %v799 = vpop.permute.xlu0 %798
  %v802 = vsel %vm118, %v750, %v799
  %v803 = vsel %vm140, %v802, 0
  %805 = vmatpush.bf16.msra.mxu0 0
  %806 = vmatpush.bf16.msra.mxu0 0
  %807 = vmatpush.bf16.msra.mxu0 0
  %808 = vmatpush.bf16.msra.mxu0 0
  %809 = vmatpush.bf16.msra.mxu0 0
  %810 = vmatpush.bf16.msra.mxu0 %v136
  %811 = vmatpush.bf16.msra.mxu0 %v135
  %812 = vmatpush.bf16.msra.mxu0 %v134
  %813 = vmatmul.bf16.gmra.mxu0 %v803
  %v814 = vpop.f32.mrf.mxu0
  %v815 = vadd.f32 %v48, %v814
  %v816 = vpop.f32.mrf.mxu0
  %817 = vdwg.mxu0
  %v818 = vxor.u32 %v815, 2147483648
  %v819 = vmul.f32 %v818, 1.442695
  %v820 = vpow.pop %v819
  %v821 = vadd.f32 %v820, 1.0
  %v822 = vrcp.pop %v821
  %v823 = vmul.f32 %v821, %v822
  %v824 = vsub.f32 1.0, %v823
  %v825 = vmul.f32 %v822, %v824
  %v826 = vadd.f32 %v822, %v825
  %vm827 = vweird.f32 %v821
  %vm828 = vweird.f32 %v822
  %vm829 = vmor %vm827, %vm828
  %v830 = vsel %vm829, %v822, %v826
  %v831 = vand.u32 2147483647, %v821
  %vm832 = vcmp.eq.f32.partialorder %v831, 8.507059e+37
  %v833 = vand.u32 %v821, 2147483648
  %v834 = vor.u32 1.1754944e-38, %v833
  %v835 = vsel %vm832, %v834, %v830
  %v836 = vmul.f32 1.0, %v835
  %v837 = vtanh.pop %v815
  %v838 = vmul.f32 %v836, %v667
  %840 = vrot.lane.b32.xlu0 %v837, 32
  %v841 = vpop.permute.xlu0 %840
  %v843 = vmul.f32 %v836, %v841
  %845 = vrot.lane.b32.xlu0 %v843, 32
  %v846 = vpop.permute.xlu0 %845
  %v848 = vadd.f32 %v838, %v846
  %v849 = vtanh.pop %v848
  %851 = vrot.lane.b32.xlu0 %v849, 32
  %v852 = vpop.permute.xlu0 %851
  %v854 = vmul.f32 %v836, %v852
  %v855 = vpack.c.bf16 %v854, %v854
  %v856 = vpack.c.bf16 %v740, %v740
  %v858 = vunpack.c.l.b16 %v856
  %v859 = vpack.c.b16 %v858, %v858
  %860 = vrot.lane.b32.xlu0 %v859, 64
  %v861 = vpop.permute.xlu0 %860
  %v863 = vunpack.c.l.b16 %v855
  %v864 = vpack.c.b16 %v863, %v863
  %865 = vrot.lane.b32.xlu0 %v864, 96
  %v866 = vpop.permute.xlu0 %865
  %v869 = vsel %vm118, %v861, %v866
  %v870 = vsel %vm225, %v869, 0
  %872 = vmatpush.bf16.msra.mxu0 0
  %873 = vmatpush.bf16.msra.mxu0 0
  %874 = vmatpush.bf16.msra.mxu0 0
  %875 = vmatpush.bf16.msra.mxu0 0
  %876 = vmatpush.bf16.msra.mxu0 %v220
  %877 = vmatpush.bf16.msra.mxu0 %v219
  %878 = vmatpush.bf16.msra.mxu0 %v218
  %879 = vmatpush.bf16.msra.mxu0 %v217
  %880 = vmatmul.bf16.gmra.mxu0 %v870
  %v881 = vpop.f32.mrf.mxu0
  %v882 = vadd.f32 %v52, %v881
  %v883 = vpop.f32.mrf.mxu0
  %884 = vdwg.mxu0
  %v885 = vxor.u32 %v882, 2147483648
  %v886 = vmul.f32 %v885, 1.442695
  %v887 = vpow.pop %v886
  %v888 = vadd.f32 %v887, 1.0
  %v889 = vrcp.pop %v888
  %v890 = vmul.f32 %v888, %v889
  %v891 = vsub.f32 1.0, %v890
  %v892 = vmul.f32 %v889, %v891
  %v893 = vadd.f32 %v889, %v892
  %vm894 = vweird.f32 %v888
  %vm895 = vweird.f32 %v889
  %vm896 = vmor %vm894, %vm895
  %v897 = vsel %vm896, %v889, %v893
  %v898 = vand.u32 2147483647, %v888
  %vm899 = vcmp.eq.f32.partialorder %v898, 8.507059e+37
  %v900 = vand.u32 %v888, 2147483648
  %v901 = vor.u32 1.1754944e-38, %v900
  %v902 = vsel %vm899, %v901, %v897
  %v903 = vmul.f32 1.0, %v902
  %v904 = vtanh.pop %v882
  %v905 = vmul.f32 %v903, %v734
  %907 = vrot.lane.b32.xlu0 %v904, 32
  %v908 = vpop.permute.xlu0 %907
  %v910 = vmul.f32 %v903, %v908
  %912 = vrot.lane.b32.xlu0 %v910, 32
  %v913 = vpop.permute.xlu0 %912
  %v915 = vadd.f32 %v905, %v913
  %v916 = vtanh.pop %v915
  %918 = vrot.lane.b32.xlu0 %v916, 32
  %v919 = vpop.permute.xlu0 %918
  %v921 = vmul.f32 %v903, %v919
  %922 = vrot.lane.b32.xlu0 %v864, 64
  %v923 = vpop.permute.xlu0 %922
  %v924 = vrot.slane %v775, 5
  %v925 = vrot.slane %v776, 4
  %v926 = vsel %vm95, %v925, %v924
  %v927 = vrot.slane %v777, 3
  %v928 = vsel %vm98, %v927, %v926
  %v929 = vrot.slane %v778, 2
  %v930 = vsel %vm101, %v929, %v928
  %v931 = vrot.slane %v779, 1
  %v932 = vsel %vm104, %v931, %v930
  %v933 = vsel %vm107, %v780, %v932
  %v934 = vrot.slane %v781, 7
  %v935 = vsel %vm110, %v934, %v933
  %v936 = vrot.slane %v782, 6
  %v937 = vsel %vm113, %v936, %v935
  %v938 = vpack.c.b16 %v937, %v937
  %939 = vrot.lane.b32.xlu0 %v938, 32
  %v940 = vpop.permute.xlu0 %939
  %v943 = vsel %vm118, %v923, %v940
  %v944 = vsel %vm140, %v943, 0
  %946 = vmatpush.bf16.msra.mxu0 0
  %947 = vmatpush.bf16.msra.mxu0 0
  %948 = vmatpush.bf16.msra.mxu0 0
  %949 = vmatpush.bf16.msra.mxu0 0
  %950 = vmatpush.bf16.msra.mxu0 0
  %951 = vmatpush.bf16.msra.mxu0 %v136
  %952 = vmatpush.bf16.msra.mxu0 %v135
  %953 = vmatpush.bf16.msra.mxu0 %v134
  %954 = vmatmul.bf16.gmra.mxu0 %v944
  %v955 = vpop.f32.mrf.mxu0
  %v956 = vadd.f32 %v48, %v955
  %v957 = vpop.f32.mrf.mxu0
  %958 = vdwg.mxu0
  %v959 = vxor.u32 %v956, 2147483648
  %v960 = vmul.f32 %v959, 1.442695
  %v961 = vpow.pop %v960
  %v962 = vadd.f32 %v961, 1.0
  %v963 = vrcp.pop %v962
  %v964 = vmul.f32 %v962, %v963
  %v965 = vsub.f32 1.0, %v964
  %v966 = vmul.f32 %v963, %v965
  %v967 = vadd.f32 %v963, %v966
  %vm968 = vweird.f32 %v962
  %vm969 = vweird.f32 %v963
  %vm970 = vmor %vm968, %vm969
  %v971 = vsel %vm970, %v963, %v967
  %v972 = vand.u32 2147483647, %v962
  %vm973 = vcmp.eq.f32.partialorder %v972, 8.507059e+37
  %v974 = vand.u32 %v962, 2147483648
  %v975 = vor.u32 1.1754944e-38, %v974
  %v976 = vsel %vm973, %v975, %v971
  %v977 = vmul.f32 1.0, %v976
  %v978 = vtanh.pop %v956
  %v979 = vmul.f32 %v977, %v848
  %981 = vrot.lane.b32.xlu0 %v978, 32
  %v982 = vpop.permute.xlu0 %981
  %v984 = vmul.f32 %v977, %v982
  %986 = vrot.lane.b32.xlu0 %v984, 32
  %v987 = vpop.permute.xlu0 %986
  %v989 = vadd.f32 %v979, %v987
  %v990 = vtanh.pop %v989
  %992 = vrot.lane.b32.xlu0 %v990, 32
  %v993 = vpop.permute.xlu0 %992
  %v995 = vmul.f32 %v977, %v993
  %v996 = vpack.c.bf16 %v995, %v995
  %v997 = vpack.c.bf16 %v921, %v921
  %v999 = vunpack.c.l.b16 %v997
  %v1000 = vpack.c.b16 %v999, %v999
  %1001 = vrot.lane.b32.xlu0 %v1000, 64
  %v1002 = vpop.permute.xlu0 %1001
  %v1004 = vunpack.c.l.b16 %v996
  %v1005 = vpack.c.b16 %v1004, %v1004
  %1006 = vrot.lane.b32.xlu0 %v1005, 96
  %v1007 = vpop.permute.xlu0 %1006
  %v1010 = vsel %vm118, %v1002, %v1007
  %v1011 = vsel %vm225, %v1010, 0
  %1013 = vmatpush.bf16.msra.mxu0 0
  %1014 = vmatpush.bf16.msra.mxu0 0
  %1015 = vmatpush.bf16.msra.mxu0 0
  %1016 = vmatpush.bf16.msra.mxu0 0
  %1017 = vmatpush.bf16.msra.mxu0 %v220
  %1018 = vmatpush.bf16.msra.mxu0 %v219
  %1019 = vmatpush.bf16.msra.mxu0 %v218
  %1020 = vmatpush.bf16.msra.mxu0 %v217
  %1021 = vmatmul.bf16.gmra.mxu0 %v1011
  %v1022 = vpop.f32.mrf.mxu0
  %v1023 = vadd.f32 %v52, %v1022
  %v1024 = vpop.f32.mrf.mxu0
  %1025 = vdwg.mxu0
  %v1026 = vxor.u32 %v1023, 2147483648
  %v1027 = vmul.f32 %v1026, 1.442695
  %v1028 = vpow.pop %v1027
  %v1029 = vadd.f32 %v1028, 1.0
  %v1030 = vrcp.pop %v1029
  %v1031 = vmul.f32 %v1029, %v1030
  %v1032 = vsub.f32 1.0, %v1031
  %v1033 = vmul.f32 %v1030, %v1032
  %v1034 = vadd.f32 %v1030, %v1033
  %vm1035 = vweird.f32 %v1029
  %vm1036 = vweird.f32 %v1030
  %vm1037 = vmor %vm1035, %vm1036
  %v1038 = vsel %vm1037, %v1030, %v1034
  %v1039 = vand.u32 2147483647, %v1029
  %vm1040 = vcmp.eq.f32.partialorder %v1039, 8.507059e+37
  %v1041 = vand.u32 %v1029, 2147483648
  %v1042 = vor.u32 1.1754944e-38, %v1041
  %v1043 = vsel %vm1040, %v1042, %v1038
  %v1044 = vmul.f32 1.0, %v1043
  %v1045 = vtanh.pop %v1023
  %v1046 = vmul.f32 %v1044, %v915
  %1048 = vrot.lane.b32.xlu0 %v1045, 32
  %v1049 = vpop.permute.xlu0 %1048
  %v1051 = vmul.f32 %v1044, %v1049
  %1053 = vrot.lane.b32.xlu0 %v1051, 32
  %v1054 = vpop.permute.xlu0 %1053
  %v1056 = vadd.f32 %v1046, %v1054
  %v1057 = vtanh.pop %v1056
  %1059 = vrot.lane.b32.xlu0 %v1057, 32
  %v1060 = vpop.permute.xlu0 %1059
  %v1062 = vmul.f32 %v1044, %v1060
  %v1063 = vld [vmem:[%s0] sm:$0x8]
  %v1064 = vld [vmem:[%s0 + $0x4] sm:$0x8]
  %v1065 = vld [vmem:[%s0 + $0x8] sm:$0x8]
  %v1066 = vld [vmem:[%s0 + $0xc] sm:$0x8]
  %v1067 = vld [vmem:[%s0 + $0x10] sm:$0x8]
  %v1068 = vld [vmem:[%s0 + $0x14] sm:$0x8]
  %v1069 = vld [vmem:[%s0 + $0x18] sm:$0x8]
  %v1070 = vld [vmem:[%s0 + $0x1c] sm:$0x8]
  %1071 = vrot.lane.b32.xlu0 %v1005, 64
  %v1072 = vpop.permute.xlu0 %1071
  %v1081 = vunpack.c.l.b16 %v1063
  %v1082 = vunpack.c.l.b16 %v1064
  %v1083 = vunpack.c.l.b16 %v1065
  %v1084 = vunpack.c.l.b16 %v1066
  %v1085 = vunpack.c.l.b16 %v1067
  %v1086 = vunpack.c.l.b16 %v1068
  %v1087 = vunpack.c.l.b16 %v1069
  %v1088 = vunpack.c.l.b16 %v1070
  %v1089 = vpack.c.b16 %v1081, %v1081
  %v1090 = vpack.c.b16 %v1082, %v1082
  %v1091 = vpack.c.b16 %v1083, %v1083
  %v1092 = vpack.c.b16 %v1084, %v1084
  %v1093 = vpack.c.b16 %v1085, %v1085
  %v1094 = vpack.c.b16 %v1086, %v1086
  %v1095 = vpack.c.b16 %v1087, %v1087
  %v1096 = vpack.c.b16 %v1088, %v1088
  %v1097 = vunpack.c.l.b16 %v1089
  %v1098 = vunpack.c.l.b16 %v1090
  %v1099 = vunpack.c.l.b16 %v1091
  %v1100 = vunpack.c.l.b16 %v1092
  %v1101 = vunpack.c.l.b16 %v1093
  %v1102 = vunpack.c.l.b16 %v1094
  %v1103 = vunpack.c.l.b16 %v1095
  %v1104 = vunpack.c.l.b16 %v1096
  %v1105 = vrot.slane %v1097, 6
  %v1106 = vrot.slane %v1098, 5
  %v1107 = vsel %vm95, %v1106, %v1105
  %v1108 = vrot.slane %v1099, 4
  %v1109 = vsel %vm98, %v1108, %v1107
  %v1110 = vrot.slane %v1100, 3
  %v1111 = vsel %vm101, %v1110, %v1109
  %v1112 = vrot.slane %v1101, 2
  %v1113 = vsel %vm104, %v1112, %v1111
  %v1114 = vrot.slane %v1102, 1
  %v1115 = vsel %vm107, %v1114, %v1113
  %v1116 = vsel %vm110, %v1103, %v1115
  %v1117 = vrot.slane %v1104, 7
  %v1118 = vsel %vm113, %v1117, %v1116
  %v1119 = vpack.c.b16 %v1118, %v1118
  %1120 = vrot.lane.b32.xlu0 %v1119, 32
  %v1121 = vpop.permute.xlu0 %1120
  %v1124 = vsel %vm118, %v1072, %v1121
  %v1125 = vsel %vm140, %v1124, 0
  %1127 = vmatpush.bf16.msra.mxu0 0
  %1128 = vmatpush.bf16.msra.mxu0 0
  %1129 = vmatpush.bf16.msra.mxu0 0
  %1130 = vmatpush.bf16.msra.mxu0 0
  %1131 = vmatpush.bf16.msra.mxu0 0
  %1132 = vmatpush.bf16.msra.mxu0 %v136
  %1133 = vmatpush.bf16.msra.mxu0 %v135
  %1134 = vmatpush.bf16.msra.mxu0 %v134
  %1135 = vmatmul.bf16.gmra.mxu0 %v1125
  %v1136 = vpop.f32.mrf.mxu0
  %v1137 = vadd.f32 %v48, %v1136
  %v1138 = vpop.f32.mrf.mxu0
  %1139 = vdwg.mxu0
  %v1140 = vxor.u32 %v1137, 2147483648
  %v1141 = vmul.f32 %v1140, 1.442695
  %v1142 = vpow.pop %v1141
  %v1143 = vadd.f32 %v1142, 1.0
  %v1144 = vrcp.pop %v1143
  %v1145 = vmul.f32 %v1143, %v1144
  %v1146 = vsub.f32 1.0, %v1145
  %v1147 = vmul.f32 %v1144, %v1146
  %v1148 = vadd.f32 %v1144, %v1147
  %vm1149 = vweird.f32 %v1143
  %vm1150 = vweird.f32 %v1144
  %vm1151 = vmor %vm1149, %vm1150
  %v1152 = vsel %vm1151, %v1144, %v1148
  %v1153 = vand.u32 2147483647, %v1143
  %vm1154 = vcmp.eq.f32.partialorder %v1153, 8.507059e+37
  %v1155 = vand.u32 %v1143, 2147483648
  %v1156 = vor.u32 1.1754944e-38, %v1155
  %v1157 = vsel %vm1154, %v1156, %v1152
  %v1158 = vmul.f32 1.0, %v1157
  %v1159 = vtanh.pop %v1137
  %v1160 = vmul.f32 %v1158, %v989
  %1162 = vrot.lane.b32.xlu0 %v1159, 32
  %v1163 = vpop.permute.xlu0 %1162
  %v1165 = vmul.f32 %v1158, %v1163
  %1167 = vrot.lane.b32.xlu0 %v1165, 32
  %v1168 = vpop.permute.xlu0 %1167
  %v1170 = vadd.f32 %v1160, %v1168
  %v1171 = vtanh.pop %v1170
  %1173 = vrot.lane.b32.xlu0 %v1171, 32
  %v1174 = vpop.permute.xlu0 %1173
  %v1176 = vmul.f32 %v1158, %v1174
  %v1177 = vpack.c.bf16 %v1176, %v1176
  %v1178 = vpack.c.bf16 %v1062, %v1062
  %v1180 = vunpack.c.l.b16 %v1178
  %v1181 = vpack.c.b16 %v1180, %v1180
  %1182 = vrot.lane.b32.xlu0 %v1181, 64
  %v1183 = vpop.permute.xlu0 %1182
  %v1185 = vunpack.c.l.b16 %v1177
  %v1186 = vpack.c.b16 %v1185, %v1185
  %1187 = vrot.lane.b32.xlu0 %v1186, 96
  %v1188 = vpop.permute.xlu0 %1187
  %v1191 = vsel %vm118, %v1183, %v1188
  %v1192 = vsel %vm225, %v1191, 0
  %1194 = vmatpush.bf16.msra.mxu0 0
  %1195 = vmatpush.bf16.msra.mxu0 0
  %1196 = vmatpush.bf16.msra.mxu0 0
  %1197 = vmatpush.bf16.msra.mxu0 0
  %1198 = vmatpush.bf16.msra.mxu0 %v220
  %1199 = vmatpush.bf16.msra.mxu0 %v219
  %1200 = vmatpush.bf16.msra.mxu0 %v218
  %1201 = vmatpush.bf16.msra.mxu0 %v217
  %1202 = vmatmul.bf16.gmra.mxu0 %v1192
  %v1203 = vpop.f32.mrf.mxu0
  %v1204 = vadd.f32 %v52, %v1203
  %v1205 = vpop.f32.mrf.mxu0
  %1206 = vdwg.mxu0
  %v1207 = vxor.u32 %v1204, 2147483648
  %v1208 = vmul.f32 %v1207, 1.442695
  %v1209 = vpow.pop %v1208
  %v1210 = vadd.f32 %v1209, 1.0
  %v1211 = vrcp.pop %v1210
  %v1212 = vmul.f32 %v1210, %v1211
  %v1213 = vsub.f32 1.0, %v1212
  %v1214 = vmul.f32 %v1211, %v1213
  %v1215 = vadd.f32 %v1211, %v1214
  %vm1216 = vweird.f32 %v1210
  %vm1217 = vweird.f32 %v1211
  %vm1218 = vmor %vm1216, %vm1217
  %v1219 = vsel %vm1218, %v1211, %v1215
  %v1220 = vand.u32 2147483647, %v1210
  %vm1221 = vcmp.eq.f32.partialorder %v1220, 8.507059e+37
  %v1222 = vand.u32 %v1210, 2147483648
  %v1223 = vor.u32 1.1754944e-38, %v1222
  %v1224 = vsel %vm1221, %v1223, %v1219
  %v1225 = vmul.f32 1.0, %v1224
  %v1226 = vtanh.pop %v1204
  %v1227 = vmul.f32 %v1225, %v1056
  %1229 = vrot.lane.b32.xlu0 %v1226, 32
  %v1230 = vpop.permute.xlu0 %1229
  %v1232 = vmul.f32 %v1225, %v1230
  %1234 = vrot.lane.b32.xlu0 %v1232, 32
  %v1235 = vpop.permute.xlu0 %1234
  %v1237 = vadd.f32 %v1227, %v1235
  %v1238 = vtanh.pop %v1237
  %1240 = vrot.lane.b32.xlu0 %v1238, 32
  %v1241 = vpop.permute.xlu0 %1240
  %v1243 = vmul.f32 %v1225, %v1241
  %1244 = vrot.lane.b32.xlu0 %v1186, 64
  %v1245 = vpop.permute.xlu0 %1244
  %v1246 = vrot.slane %v1097, 7
  %v1247 = vrot.slane %v1098, 6
  %v1248 = vsel %vm95, %v1247, %v1246
  %v1249 = vrot.slane %v1099, 5
  %v1250 = vsel %vm98, %v1249, %v1248
  %v1251 = vrot.slane %v1100, 4
  %v1252 = vsel %vm101, %v1251, %v1250
  %v1253 = vrot.slane %v1101, 3
  %v1254 = vsel %vm104, %v1253, %v1252
  %v1255 = vrot.slane %v1102, 2
  %v1256 = vsel %vm107, %v1255, %v1254
  %v1257 = vrot.slane %v1103, 1
  %v1258 = vsel %vm110, %v1257, %v1256
  %v1259 = vsel %vm113, %v1104, %v1258
  %v1260 = vpack.c.b16 %v1259, %v1259
  %1261 = vrot.lane.b32.xlu0 %v1260, 32
  %v1262 = vpop.permute.xlu0 %1261
  %v1265 = vsel %vm118, %v1245, %v1262
  %v1266 = vsel %vm140, %v1265, 0
  %1268 = vmatpush.bf16.msra.mxu0 0
  %1269 = vmatpush.bf16.msra.mxu0 0
  %1270 = vmatpush.bf16.msra.mxu0 0
  %1271 = vmatpush.bf16.msra.mxu0 0
  %1272 = vmatpush.bf16.msra.mxu0 0
  %1273 = vmatpush.bf16.msra.mxu0 %v136
  %1274 = vmatpush.bf16.msra.mxu0 %v135
  %1275 = vmatpush.bf16.msra.mxu0 %v134
  %1276 = vmatmul.bf16.gmra.mxu0 %v1266
  %v1277 = vpop.f32.mrf.mxu0
  %v1278 = vadd.f32 %v48, %v1277
  %v1279 = vpop.f32.mrf.mxu0
  %1280 = vdwg.mxu0
  %v1281 = vxor.u32 %v1278, 2147483648
  %v1282 = vmul.f32 %v1281, 1.442695
  %v1283 = vpow.pop %v1282
  %v1284 = vadd.f32 %v1283, 1.0
  %v1285 = vrcp.pop %v1284
  %v1286 = vmul.f32 %v1284, %v1285
  %v1287 = vsub.f32 1.0, %v1286
  %v1288 = vmul.f32 %v1285, %v1287
  %v1289 = vadd.f32 %v1285, %v1288
  %vm1290 = vweird.f32 %v1284
  %vm1291 = vweird.f32 %v1285
  %vm1292 = vmor %vm1290, %vm1291
  %v1293 = vsel %vm1292, %v1285, %v1289
  %v1294 = vand.u32 2147483647, %v1284
  %vm1295 = vcmp.eq.f32.partialorder %v1294, 8.507059e+37
  %v1296 = vand.u32 %v1284, 2147483648
  %v1297 = vor.u32 1.1754944e-38, %v1296
  %v1298 = vsel %vm1295, %v1297, %v1293
  %v1299 = vmul.f32 1.0, %v1298
  %v1300 = vtanh.pop %v1278
  %v1301 = vmul.f32 %v1299, %v1170
  %1303 = vrot.lane.b32.xlu0 %v1300, 32
  %v1304 = vpop.permute.xlu0 %1303
  %v1306 = vmul.f32 %v1299, %v1304
  %1308 = vrot.lane.b32.xlu0 %v1306, 32
  %v1309 = vpop.permute.xlu0 %1308
  %v1311 = vadd.f32 %v1301, %v1309
  %v1312 = vtanh.pop %v1311
  %1314 = vrot.lane.b32.xlu0 %v1312, 32
  %v1315 = vpop.permute.xlu0 %1314
  %v1317 = vmul.f32 %v1299, %v1315
  %v1318 = vpack.c.bf16 %v1317, %v1317
  %v1319 = vpack.c.bf16 %v1243, %v1243
  %v1321 = vunpack.c.l.b16 %v1319
  %v1322 = vpack.c.b16 %v1321, %v1321
  %1323 = vrot.lane.b32.xlu0 %v1322, 64
  %v1324 = vpop.permute.xlu0 %1323
  %v1326 = vunpack.c.l.b16 %v1318
  %v1327 = vpack.c.b16 %v1326, %v1326
  %1328 = vrot.lane.b32.xlu0 %v1327, 96
  %v1329 = vpop.permute.xlu0 %1328
  %v1332 = vsel %vm118, %v1324, %v1329
  %v1333 = vsel %vm225, %v1332, 0
  %1335 = vmatpush.bf16.msra.mxu0 0
  %1336 = vmatpush.bf16.msra.mxu0 0
  %1337 = vmatpush.bf16.msra.mxu0 0
  %1338 = vmatpush.bf16.msra.mxu0 0
  %1339 = vmatpush.bf16.msra.mxu0 %v220
  %1340 = vmatpush.bf16.msra.mxu0 %v219
  %1341 = vmatpush.bf16.msra.mxu0 %v218
  %1342 = vmatpush.bf16.msra.mxu0 %v217
  %1343 = vmatmul.bf16.gmra.mxu0 %v1333
  %v1344 = vpop.f32.mrf.mxu0
  %v1345 = vadd.f32 %v52, %v1344
  %v1346 = vpop.f32.mrf.mxu0
  %1347 = vdwg.mxu0
  %v1348 = vxor.u32 %v1345, 2147483648
  %v1349 = vmul.f32 %v1348, 1.442695
  %v1350 = vpow.pop %v1349
  %v1351 = vadd.f32 %v1350, 1.0
  %v1352 = vrcp.pop %v1351
  %v1353 = vmul.f32 %v1351, %v1352
  %v1354 = vsub.f32 1.0, %v1353
  %v1355 = vmul.f32 %v1352, %v1354
  %v1356 = vadd.f32 %v1352, %v1355
  %vm1357 = vweird.f32 %v1351
  %vm1358 = vweird.f32 %v1352
  %vm1359 = vmor %vm1357, %vm1358
  %v1360 = vsel %vm1359, %v1352, %v1356
  %v1361 = vand.u32 2147483647, %v1351
  %vm1362 = vcmp.eq.f32.partialorder %v1361, 8.507059e+37
  %v1363 = vand.u32 %v1351, 2147483648
  %v1364 = vor.u32 1.1754944e-38, %v1363
  %v1365 = vsel %vm1362, %v1364, %v1360
  %v1366 = vmul.f32 1.0, %v1365
  %v1367 = vtanh.pop %v1345
  %v1368 = vmul.f32 %v1366, %v1237
  %1370 = vrot.lane.b32.xlu0 %v1367, 32
  %v1371 = vpop.permute.xlu0 %1370
  %v1373 = vmul.f32 %v1366, %v1371
  %1375 = vrot.lane.b32.xlu0 %v1373, 32
  %v1376 = vpop.permute.xlu0 %1375
  %v1378 = vadd.f32 %v1368, %v1376
  %v1379 = vtanh.pop %v1378
  %1381 = vrot.lane.b32.xlu0 %v1379, 32
  %v1382 = vpop.permute.xlu0 %1381
  %v1384 = vmul.f32 %v1366, %v1382
  %v1385 = vpack.c.bf16 %v1384, %v1384
  %v1387 = vperm.slane %v45, 0
  %1390 = vrot.lane.b32.xlu0 %v1385, 64
  %v1391 = vpop.permute.xlu0 %1390
  %v1396 = vunpack.c.l.b16 %v41
  %v1397 = vunpack.c.l.b16 %v42
  %v1398 = vunpack.c.l.b16 %v43
  %v1399 = vunpack.c.l.b16 %v44
  %v1400 = vpack.c.b16 %v1397, %v1396
  %v1401 = vpack.c.b16 %v1399, %v1398
  %v1405 = vsel %vm118, %v1391, 0
  %1407 = vmatpush.bf16.msra.mxu0 0
  %1408 = vmatpush.bf16.msra.mxu0 0
  %1409 = vmatpush.bf16.msra.mxu0 0
  %1410 = vmatpush.bf16.msra.mxu0 0
  %1411 = vmatpush.bf16.msra.mxu0 0
  %1412 = vmatpush.bf16.msra.mxu0 0
  %1413 = vmatpush.bf16.msra.mxu0 %v1401
  %1414 = vmatpush.bf16.msra.mxu0 %v1400
  %1415 = vmatmul.bf16.gmra.mxu0 %v1405
  %v1416 = vpop.f32.mrf.mxu0
  %v1417 = vadd.f32 %v1387, %v1416
  %v1418 = vpop.f32.mrf.mxu0
  %1419 = vdwg.mxu0
  %vm1420 = vcmask 31744
  %1421 = vst.msk [vmem:[%s7] sm:$0xff] %vm1420, %v1417
  // Predicated region
  $region30: #{lstm_model_forward.1} parent=0 // pred_check
    _
  $region31: #{lstm_model_forward.1} parent=0 // pred_check_branch
    %1423 = sbr.rel (0) target = $region33
  $region32: #{lstm_model_forward.1} parent=0 // pred_region
    _
  $region33: #{lstm_model_forward.1} parent=0 // pred_fallthru
    _
  // Predicated region
  $region34: #{lstm_model_forward.1} parent=0 // pred_check
    _
  $region35: #{lstm_model_forward.1} parent=0 // pred_check_branch
    %1425 = sbr.rel (0) target = $region37
  $region36: #{lstm_model_forward.1} parent=0 // pred_region
    _
  $region37: #{lstm_model_forward.1} parent=0 // pred_fallthru
    _

</llo_original>
